<compile_context>
chip_gen: v6e
topology: v6e:2x2x1
jax: 0.10.0
libtpu: 0.0.40
codegen_flags: <defaults>
</compile_context>

<pallas_src>
import jax
import jax.numpy as jnp
from jax import lax
from jax.experimental import pallas as pl
from jax.experimental.pallas import tpu as pltpu


def fm_kernel(idx_ref, xc_ref, uemb_ref, memb_ref, wc_ref,
              bc_ref, wout_ref, bout_ref, out_ref):
    Up = uemb_ref.shape[1]            # padded user vocab
    Mp = memb_ref.shape[1]            # padded movie vocab
    tb = out_ref.shape[1]             # batch tile (lane axis)

    idx = idx_ref[...]                # (2, tb) int32; row 0 = user, row 1 = movie
    uidx = idx[0:1, :]
    midx = idx[1:2, :]

    # Fused gather: bf16 one-hot (entries exactly 0/1) x resident bf16 table on
    # the MXU with f32 accumulation -> exact row gather in one native MXU pass.
    oh_u = (lax.broadcasted_iota(jnp.int32, (Up, tb), 0) == uidx).astype(jnp.bfloat16)
    oh_m = (lax.broadcasted_iota(jnp.int32, (Mp, tb), 0) == midx).astype(jnp.bfloat16)
    u_t = jnp.dot(uemb_ref[...], oh_u, preferred_element_type=jnp.float32)   # (Dp, tb)
    v_t = jnp.dot(memb_ref[...], oh_m, preferred_element_type=jnp.float32)   # (Dp, tb)

    # Tables carry [emb | bias | 1] / [emb | 1 | bias] rows (zero padded), so a
    # single row-sum of the product is: interaction + user_bias + movie_bias.
    fm_cat = jnp.sum(u_t * v_t, axis=0, keepdims=True)                       # (1, tb)

    # linear_cont: exact f32 multiply + row-sum (C is tiny); for larger C this
    # would become a single (1, C) x (C, tb) MXU dot instead.
    lc = jnp.sum(xc_ref[...] * wc_ref[...], axis=0, keepdims=True) + bc_ref[0]

    # TODO(synk): Dropout(p=0.2) is identity in eval/inference mode; not emitted.
    out_ref[...] = (fm_cat + lc) * wout_ref[0] + bout_ref[0]    # output Linear(1, 1)


def fm_forward(params, X_cat, X_cont, *, tb=4096):
    B = X_cat.shape[0]
    C = X_cont.shape[1]
    U, D = params["user_emb"].shape
    M = params["movie_emb"].shape[0]

    lane = 128
    # Vocab (MXU K) pre-padded to a multiple of 256; folded row dim padded to a
    # sublane multiple, so Mosaic never has to pad per matmul.
    Upad = pl.cdiv(U, 256) * 256
    Mpad = pl.cdiv(M, 256) * 256
    D2 = D + 2                                  # emb rows + bias row + ones row
    Dp = pl.cdiv(D2, 8) * 8

    # Batch tile: big by default (amortize per-step overhead), but
    #  * lane aligned,
    #  * capped so the two (vocab_pad, tb) bf16 one-hots stay ~<= 8 MiB,
    #  * capped so small batches still give >= 2 grid steps (megacore / v7x
    #    sharding of the single "parallel" axis) without over-padding.
    tb = max(lane, (tb // lane) * lane)
    onehot_budget = 8 * 1024 * 1024
    tb = min(tb, max(lane, (onehot_budget // (2 * (Upad + Mpad))) // lane * lane))
    tb = min(tb, max(lane, pl.cdiv(B, 2 * lane) * lane))

    B_pad = pl.cdiv(B, tb) * tb
    grid = B_pad // tb
    pad = B_pad - B

    # Lane-dense batch slabs. Padded lanes carry index 0 / zeros: they gather
    # real row 0 of the tables, which is harmless because the padded outputs
    # are sliced off below and never reduced over.
    idx = jnp.pad(X_cat.astype(jnp.int32), ((0, pad), (0, 0))).T             # (2, B_pad)
    xc_t = jnp.pad(X_cont.astype(jnp.float32), ((0, pad), (0, 0))).T         # (C, B_pad)

    # Folded, transposed, vocab-padded, bf16 tables (at scale these would be
    # stored pre-folded / pre-transposed in exactly this form).
    u_fold = jnp.concatenate(
        [params["user_emb"], params["user_bias"], jnp.ones((U, 1), jnp.float32)], axis=1)
    m_fold = jnp.concatenate(
        [params["movie_emb"], jnp.ones((M, 1), jnp.float32), params["movie_bias"]], axis=1)
    u_fold = jnp.pad(u_fold.T, ((0, Dp - D2), (0, Upad - U))).astype(jnp.bfloat16)
    m_fold = jnp.pad(m_fold.T, ((0, Dp - D2), (0, Mpad - M))).astype(jnp.bfloat16)

    wc_col = params["w_cont"].T.astype(jnp.float32)                          # (C, 1)

    stream_specs = [
        pl.BlockSpec((2, tb), lambda i: (0, i)),      # merged user/movie indices
        pl.BlockSpec((C, tb), lambda i: (0, i)),      # X_cont^T
    ]
    tail_specs = [
        pl.BlockSpec((C, 1), lambda i: (0, 0)),       # linear_cont weight column
        pl.BlockSpec(memory_space=pltpu.SMEM),        # linear_cont bias
        pl.BlockSpec(memory_space=pltpu.SMEM),        # output weight
        pl.BlockSpec(memory_space=pltpu.SMEM),        # output bias
    ]

    def resident_specs(single_buffered):
        # Constant block index => DMA'd once; Buffered(1) drops the (useless)
        # second buffer and halves the resident-table VMEM footprint.
        kw = dict(pipeline_mode=pl.Buffered(1)) if single_buffered else {}
        return [pl.BlockSpec((Dp, Upad), lambda i: (0, 0), **kw),
                pl.BlockSpec((Dp, Mpad), lambda i: (0, 0), **kw)]

    def run(single_buffered):
        return pl.pallas_call(
            fm_kernel,
            out_shape=jax.ShapeDtypeStruct((1, B_pad), jnp.float32),
            grid_spec=pltpu.PrefetchScalarGridSpec(
                num_scalar_prefetch=0,
                grid=(grid,),
                in_specs=stream_specs + resident_specs(single_buffered) + tail_specs,
                out_specs=pl.BlockSpec((1, tb), lambda i: (0, i)),
            ),
            compiler_params=pltpu.CompilerParams(
                dimension_semantics=("parallel",)),
        )(idx, xc_t, u_fold, m_fold, wc_col,
          params["b_cont"], params["w_out"], params["b_out"])

    try:
        out = run(single_buffered=True)
    except Exception:
        # Fallback for jax versions without BlockSpec.pipeline_mode support.
        out = run(single_buffered=False)

    return out[0, :B]                                   # drop batch padding -> (B,)


def fm_reference(params, X_cat, X_cont):
    """Pure-JAX f32 reference with the PyTorch module's forward semantics
    (Dropout is identity in eval mode)."""
    user_idx = X_cat[:, 0]
    movie_idx = X_cat[:, 1]
    user_vec = jnp.take(params["user_emb"], user_idx, axis=0)
    movie_vec = jnp.take(params["movie_emb"], movie_idx, axis=0)
    interaction = jnp.sum(user_vec * movie_vec, axis=1, keepdims=True)
    linear_cat = (jnp.take(params["user_bias"], user_idx, axis=0)
                  + jnp.take(params["movie_bias"], movie_idx, axis=0))
    linear_cont = (jnp.sum(X_cont * params["w_cont"], axis=1, keepdims=True)
                   + params["b_cont"])
    out = interaction + linear_cat + linear_cont
    out = out * params["w_out"] + params["b_out"]
    return out[:, 0]


def init_params(key, num_users, num_movies, num_cont_features, emb_dim):
    """f32 parameters with PyTorch-default-style inits (nn.Embedding ~ N(0,1),
    nn.Linear ~ U(-1/sqrt(fan_in), +1/sqrt(fan_in))). Parameters stay f32; the
    kernel wrapper casts its folded table copies to bf16 at the call boundary."""
    ks = jax.random.split(key, 8)
    inv = 1.0 / float(num_cont_features) ** 0.5
    return {
        "user_emb":   jax.random.normal(ks[0], (num_users, emb_dim), jnp.float32),
        "movie_emb":  jax.random.normal(ks[1], (num_movies, emb_dim), jnp.float32),
        "user_bias":  jax.random.normal(ks[2], (num_users, 1), jnp.float32),
        "movie_bias": jax.random.normal(ks[3], (num_movies, 1), jnp.float32),
        "w_cont": jax.random.uniform(ks[4], (1, num_cont_features), jnp.float32, -inv, inv),
        "b_cont": jax.random.uniform(ks[5], (1,), jnp.float32, -inv, inv),
        "w_out":  jax.random.uniform(ks[6], (1,), jnp.float32, -1.0, 1.0),
        "b_out":  jax.random.uniform(ks[7], (1,), jnp.float32, -1.0, 1.0),
    }


if __name__ == "__main__":
    num_users, num_movies, num_cont, emb_dim = 32, 48, 8, 64
    batch = 200     # not lane-aligned: exercises padding; the tb clamp keeps a
                    # 2-step grid (multi-step + megacore path) even at B=200.

    key = jax.random.PRNGKey(0)
    k_params, k_u, k_m, k_cont = jax.random.split(key, 4)
    params = init_params(k_params, num_users, num_movies, num_cont, emb_dim)

    X_cat = jnp.stack(
        [jax.random.randint(k_u, (batch,), 0, num_users, dtype=jnp.int32),
         jax.random.randint(k_m, (batch,), 0, num_movies, dtype=jnp.int32)],
        axis=1)                                              # (B, 2) int32
    X_cont = jax.random.normal(k_cont, (batch, num_cont), jnp.float32)

    out = jax.block_until_ready(fm_forward(params, X_cat, X_cont))
    assert out.shape == (batch,)

    # 1) Tight check against a reference that mirrors the kernel's bf16 table
    #    storage: the one-hot gather itself is exact, so only floating-point
    #    summation order differs.
    params_q = dict(params)
    for name in ("user_emb", "movie_emb", "user_bias", "movie_bias"):
        params_q[name] = params[name].astype(jnp.bfloat16).astype(jnp.float32)
    ref_q = fm_reference(params_q, X_cat, X_cont)
    assert jnp.allclose(out, ref_q, atol=1e-3, rtol=1e-5), \
        float(jnp.max(jnp.abs(out - ref_q)))

    # 2) Conservative bound vs. the pure-f32 PyTorch-equivalent reference; the
    #    only delta is bf16 storage of the embedding/bias tables (<= 2^-9
    #    relative per element, i.e. ~0.4% of sum_d |u_d * v_d| here).
    ref = fm_reference(params, X_cat, X_cont)
    assert float(jnp.max(jnp.abs(out - ref))) < 0.5

    print("KERNEL_OK")
</pallas_src>

<mosaic_0001>
module attributes {stable_mosaic.version = 11 : i64} {
  func.func @fm_kernel(%arg0: i32, %arg1: memref<2x128xi32, #tpu.memory_space<vmem>>, %arg2: memref<8x128xf32, #tpu.memory_space<vmem>>, %arg3: memref<72x256xbf16, #tpu.memory_space<vmem>>, %arg4: memref<72x256xbf16, #tpu.memory_space<vmem>>, %arg5: memref<8x1xf32, #tpu.memory_space<vmem>>, %arg6: memref<1xf32, #tpu.memory_space<smem>>, %arg7: memref<1xf32, #tpu.memory_space<smem>>, %arg8: memref<1xf32, #tpu.memory_space<smem>>, %arg9: memref<1x128xf32, #tpu.memory_space<vmem>>) attributes {dimension_semantics = [#tpu.dimension_semantics<parallel>], iteration_bounds = array<i64: 2>, scalar_prefetch = 0 : i64, scratch_operands = 0 : i64, tpu.core_type = #tpu.core_type<tc>, window_params = [{transform_indices = @transform_0, window_bounds = array<i64: 2, 128>}, {transform_indices = @transform_1, window_bounds = array<i64: 8, 128>}, {pipeline_mode = #tpu.pipeline_mode<synchronous>, transform_indices = @transform_2, window_bounds = array<i64: 72, 256>}, {pipeline_mode = #tpu.pipeline_mode<synchronous>, transform_indices = @transform_3, window_bounds = array<i64: 72, 256>}, {pipeline_mode = #tpu.pipeline_mode<synchronous>, transform_indices = @transform_4, window_bounds = array<i64: 8, 1>}, {transform_indices = @transform_5, window_bounds = array<i64: 1>}, {transform_indices = @transform_6, window_bounds = array<i64: 1>}, {transform_indices = @transform_7, window_bounds = array<i64: 1>}, {transform_indices = @transform_8, window_bounds = array<i64: 1, 128>}]} {
    %c0 = arith.constant 0 : index
    %c0_0 = arith.constant 0 : index
    %0 = vector.load %arg1[%c0, %c0_0] : memref<2x128xi32, #tpu.memory_space<vmem>>, vector<2x128xi32>
    %1 = vector.extract_strided_slice %0 {offsets = [0, 0], sizes = [1, 128], strides = [1, 1]} : vector<2x128xi32> to vector<1x128xi32>
    %2 = vector.extract_strided_slice %0 {offsets = [1, 0], sizes = [1, 128], strides = [1, 1]} : vector<2x128xi32> to vector<1x128xi32>
    %3 = tpu.iota {dimensions = array<i32: 0>} : vector<256x128xi32>
    %4 = vector.broadcast %1 : vector<1x128xi32> to vector<256x128xi32>
    %5 = arith.cmpi eq, %3, %4 : vector<256x128xi32>
    %6 = arith.extui %5 : vector<256x128xi1> to vector<256x128xi32>
    %7 = arith.sitofp %6 : vector<256x128xi32> to vector<256x128xf32>
    %8 = arith.truncf %7 : vector<256x128xf32> to vector<256x128xbf16>
    %9 = tpu.iota {dimensions = array<i32: 0>} : vector<256x128xi32>
    %10 = vector.broadcast %2 : vector<1x128xi32> to vector<256x128xi32>
    %11 = arith.cmpi eq, %9, %10 : vector<256x128xi32>
    %12 = arith.extui %11 : vector<256x128xi1> to vector<256x128xi32>
    %13 = arith.sitofp %12 : vector<256x128xi32> to vector<256x128xf32>
    %14 = arith.truncf %13 : vector<256x128xf32> to vector<256x128xbf16>
    %c0_1 = arith.constant 0 : index
    %c0_2 = arith.constant 0 : index
    %15 = vector.load %arg3[%c0_1, %c0_2] : memref<72x256xbf16, #tpu.memory_space<vmem>>, vector<72x256xbf16>
    %cst = arith.constant dense<0.000000e+00> : vector<72x128xf32>
    %16 = tpu.matmul %15, %8, %cst {dimension_numbers = #tpu.dot_dimension_numbers<[1], [0], [0], [1], [0, 0, 1, 1], [], []>} : vector<72x256xbf16>, vector<256x128xbf16>, vector<72x128xf32> -> vector<72x128xf32>
    %c0_3 = arith.constant 0 : index
    %c0_4 = arith.constant 0 : index
    %17 = vector.load %arg4[%c0_3, %c0_4] : memref<72x256xbf16, #tpu.memory_space<vmem>>, vector<72x256xbf16>
    %cst_5 = arith.constant dense<0.000000e+00> : vector<72x128xf32>
    %18 = tpu.matmul %17, %14, %cst_5 {dimension_numbers = #tpu.dot_dimension_numbers<[1], [0], [0], [1], [0, 0, 1, 1], [], []>} : vector<72x256xbf16>, vector<256x128xbf16>, vector<72x128xf32> -> vector<72x128xf32>
    %19 = arith.mulf %16, %18 : vector<72x128xf32>
    %cst_6 = arith.constant dense<0.000000e+00> : vector<128xf32>
    %20 = vector.multi_reduction <add>, %19, %cst_6 [0] : vector<72x128xf32> to vector<128xf32>
    %21 = vector.shape_cast %20 : vector<128xf32> to vector<1x128xf32>
    %c0_7 = arith.constant 0 : index
    %c0_8 = arith.constant 0 : index
    %22 = vector.load %arg2[%c0_7, %c0_8] : memref<8x128xf32, #tpu.memory_space<vmem>>, vector<8x128xf32>
    %c0_9 = arith.constant 0 : index
    %c0_10 = arith.constant 0 : index
    %23 = vector.load %arg5[%c0_9, %c0_10] : memref<8x1xf32, #tpu.memory_space<vmem>>, vector<8x1xf32>
    %24 = vector.broadcast %23 : vector<8x1xf32> to vector<8x128xf32>
    %25 = arith.mulf %22, %24 : vector<8x128xf32>
    %cst_11 = arith.constant dense<0.000000e+00> : vector<128xf32>
    %26 = vector.multi_reduction <add>, %25, %cst_11 [0] : vector<8x128xf32> to vector<128xf32>
    %27 = vector.shape_cast %26 : vector<128xf32> to vector<1x128xf32>
    %c0_12 = arith.constant 0 : index
    %28 = memref.load %arg6[%c0_12] : memref<1xf32, #tpu.memory_space<smem>>
    %29 = vector.broadcast %28 : f32 to vector<1x128xf32>
    %30 = arith.addf %27, %29 : vector<1x128xf32>
    %31 = arith.addf %21, %30 : vector<1x128xf32>
    %c0_13 = arith.constant 0 : index
    %32 = memref.load %arg7[%c0_13] : memref<1xf32, #tpu.memory_space<smem>>
    %33 = vector.broadcast %32 : f32 to vector<1x128xf32>
    %34 = arith.mulf %31, %33 : vector<1x128xf32>
    %c0_14 = arith.constant 0 : index
    %35 = memref.load %arg8[%c0_14] : memref<1xf32, #tpu.memory_space<smem>>
    %36 = vector.broadcast %35 : f32 to vector<1x128xf32>
    %37 = arith.addf %34, %36 : vector<1x128xf32>
    %c0_15 = arith.constant 0 : index
    %c0_16 = arith.constant 0 : index
    %38 = vector.load %arg9[%c0_15, %c0_16] : memref<1x128xf32, #tpu.memory_space<vmem>>, vector<1x128xf32>
    tpu.vector_store %arg9[%c0_15, %c0_16], %37 {strides = array<i32>} : memref<1x128xf32, #tpu.memory_space<vmem>>, vector<1x128xf32>,
    return
  }
  func.func @transform_0(%arg0: i32) -> (i32, i32) {
    %c0_i32 = arith.constant 0 : i32
    %c0_i32_0 = arith.constant 0 : i32
    return %c0_i32, %arg0 : i32, i32
  }
  func.func @transform_1(%arg0: i32) -> (i32, i32) {
    %c0_i32 = arith.constant 0 : i32
    %c0_i32_0 = arith.constant 0 : i32
    return %c0_i32, %arg0 : i32, i32
  }
  func.func @transform_2(%arg0: i32) -> (i32, i32) {
    %c0_i32 = arith.constant 0 : i32
    %c0_i32_0 = arith.constant 0 : i32
    %c0_i32_1 = arith.constant 0 : i32
    return %c0_i32, %c0_i32_0 : i32, i32
  }
  func.func @transform_3(%arg0: i32) -> (i32, i32) {
    %c0_i32 = arith.constant 0 : i32
    %c0_i32_0 = arith.constant 0 : i32
    %c0_i32_1 = arith.constant 0 : i32
    return %c0_i32, %c0_i32_0 : i32, i32
  }
  func.func @transform_4(%arg0: i32) -> (i32, i32) {
    %c0_i32 = arith.constant 0 : i32
    %c0_i32_0 = arith.constant 0 : i32
    %c0_i32_1 = arith.constant 0 : i32
    return %c0_i32, %c0_i32_0 : i32, i32
  }
  func.func @transform_5(%arg0: i32) -> i32 {
    %c0_i32 = arith.constant 0 : i32
    %c0_i32_0 = arith.constant 0 : i32
    return %c0_i32 : i32
  }
  func.func @transform_6(%arg0: i32) -> i32 {
    %c0_i32 = arith.constant 0 : i32
    %c0_i32_0 = arith.constant 0 : i32
    return %c0_i32 : i32
  }
  func.func @transform_7(%arg0: i32) -> i32 {
    %c0_i32 = arith.constant 0 : i32
    %c0_i32_0 = arith.constant 0 : i32
    return %c0_i32 : i32
  }
  func.func @transform_8(%arg0: i32) -> (i32, i32) {
    %c0_i32 = arith.constant 0 : i32
    %c0_i32_0 = arith.constant 0 : i32
    return %c0_i32, %arg0 : i32, i32
  }
}

module attributes {stable_mosaic.version = 11 : i64} {
  func.func @fm_kernel(%arg0: i32, %arg1: memref<2x128xi32, #tpu.memory_space<vmem>>, %arg2: memref<8x128xf32, #tpu.memory_space<vmem>>, %arg3: memref<72x256xbf16, #tpu.memory_space<vmem>>, %arg4: memref<72x256xbf16, #tpu.memory_space<vmem>>, %arg5: memref<8x1xf32, #tpu.memory_space<vmem>>, %arg6: memref<1xf32, #tpu.memory_space<smem>>, %arg7: memref<1xf32, #tpu.memory_space<smem>>, %arg8: memref<1xf32, #tpu.memory_space<smem>>, %arg9: memref<1x128xf32, #tpu.memory_space<vmem>>) attributes {dimension_semantics = [#tpu.dimension_semantics<parallel>], iteration_bounds = array<i64: 2>, scalar_prefetch = 0 : i64, scratch_operands = 0 : i64, tpu.core_type = #tpu.core_type<tc>, window_params = [{transform_indices = @transform_0, window_bounds = array<i64: 2, 128>}, {transform_indices = @transform_1, window_bounds = array<i64: 8, 128>}, {pipeline_mode = #tpu.pipeline_mode<synchronous>, transform_indices = @transform_2, window_bounds = array<i64: 72, 256>}, {pipeline_mode = #tpu.pipeline_mode<synchronous>, transform_indices = @transform_3, window_bounds = array<i64: 72, 256>}, {pipeline_mode = #tpu.pipeline_mode<synchronous>, transform_indices = @transform_4, window_bounds = array<i64: 8, 1>}, {transform_indices = @transform_5, window_bounds = array<i64: 1>}, {transform_indices = @transform_6, window_bounds = array<i64: 1>}, {transform_indices = @transform_7, window_bounds = array<i64: 1>}, {transform_indices = @transform_8, window_bounds = array<i64: 1, 128>}]} {
    %c0 = arith.constant 0 : index
    %c0_0 = arith.constant 0 : index
    %0 = vector.load %arg1[%c0, %c0_0] : memref<2x128xi32, #tpu.memory_space<vmem>>, vector<2x128xi32>
    %1 = vector.extract_strided_slice %0 {offsets = [0, 0], sizes = [1, 128], strides = [1, 1]} : vector<2x128xi32> to vector<1x128xi32>
    %2 = vector.extract_strided_slice %0 {offsets = [1, 0], sizes = [1, 128], strides = [1, 1]} : vector<2x128xi32> to vector<1x128xi32>
    %3 = tpu.iota {dimensions = array<i32: 0>} : vector<256x128xi32>
    %4 = vector.broadcast %1 : vector<1x128xi32> to vector<256x128xi32>
    %5 = arith.cmpi eq, %3, %4 : vector<256x128xi32>
    %6 = arith.extui %5 : vector<256x128xi1> to vector<256x128xi32>
    %7 = arith.sitofp %6 : vector<256x128xi32> to vector<256x128xf32>
    %8 = arith.truncf %7 : vector<256x128xf32> to vector<256x128xbf16>
    %9 = tpu.iota {dimensions = array<i32: 0>} : vector<256x128xi32>
    %10 = vector.broadcast %2 : vector<1x128xi32> to vector<256x128xi32>
    %11 = arith.cmpi eq, %9, %10 : vector<256x128xi32>
    %12 = arith.extui %11 : vector<256x128xi1> to vector<256x128xi32>
    %13 = arith.sitofp %12 : vector<256x128xi32> to vector<256x128xf32>
    %14 = arith.truncf %13 : vector<256x128xf32> to vector<256x128xbf16>
    %c0_1 = arith.constant 0 : index
    %c0_2 = arith.constant 0 : index
    %15 = vector.load %arg3[%c0_1, %c0_2] : memref<72x256xbf16, #tpu.memory_space<vmem>>, vector<72x256xbf16>
    %cst = arith.constant dense<0.000000e+00> : vector<72x128xf32>
    %16 = tpu.matmul %15, %8, %cst {dimension_numbers = #tpu.dot_dimension_numbers<[1], [0], [0], [1], [0, 0, 1, 1], [], []>} : vector<72x256xbf16>, vector<256x128xbf16>, vector<72x128xf32> -> vector<72x128xf32>
    %c0_3 = arith.constant 0 : index
    %c0_4 = arith.constant 0 : index
    %17 = vector.load %arg4[%c0_3, %c0_4] : memref<72x256xbf16, #tpu.memory_space<vmem>>, vector<72x256xbf16>
    %cst_5 = arith.constant dense<0.000000e+00> : vector<72x128xf32>
    %18 = tpu.matmul %17, %14, %cst_5 {dimension_numbers = #tpu.dot_dimension_numbers<[1], [0], [0], [1], [0, 0, 1, 1], [], []>} : vector<72x256xbf16>, vector<256x128xbf16>, vector<72x128xf32> -> vector<72x128xf32>
    %19 = arith.mulf %16, %18 : vector<72x128xf32>
    %cst_6 = arith.constant dense<0.000000e+00> : vector<128xf32>
    %20 = vector.multi_reduction <add>, %19, %cst_6 [0] : vector<72x128xf32> to vector<128xf32>
    %21 = vector.shape_cast %20 : vector<128xf32> to vector<1x128xf32>
    %c0_7 = arith.constant 0 : index
    %c0_8 = arith.constant 0 : index
    %22 = vector.load %arg2[%c0_7, %c0_8] : memref<8x128xf32, #tpu.memory_space<vmem>>, vector<8x128xf32>
    %c0_9 = arith.constant 0 : index
    %c0_10 = arith.constant 0 : index
    %23 = vector.load %arg5[%c0_9, %c0_10] : memref<8x1xf32, #tpu.memory_space<vmem>>, vector<8x1xf32>
    %24 = vector.broadcast %23 : vector<8x1xf32> to vector<8x128xf32>
    %25 = arith.mulf %22, %24 : vector<8x128xf32>
    %cst_11 = arith.constant dense<0.000000e+00> : vector<128xf32>
    %26 = vector.multi_reduction <add>, %25, %cst_11 [0] : vector<8x128xf32> to vector<128xf32>
    %27 = vector.shape_cast %26 : vector<128xf32> to vector<1x128xf32>
    %c0_12 = arith.constant 0 : index
    %28 = memref.load %arg6[%c0_12] : memref<1xf32, #tpu.memory_space<smem>>
    %29 = vector.broadcast %28 : f32 to vector<1x128xf32>
    %30 = arith.addf %27, %29 : vector<1x128xf32>
    %31 = arith.addf %21, %30 : vector<1x128xf32>
    %c0_13 = arith.constant 0 : index
    %32 = memref.load %arg7[%c0_13] : memref<1xf32, #tpu.memory_space<smem>>
    %33 = vector.broadcast %32 : f32 to vector<1x128xf32>
    %34 = arith.mulf %31, %33 : vector<1x128xf32>
    %c0_14 = arith.constant 0 : index
    %35 = memref.load %arg8[%c0_14] : memref<1xf32, #tpu.memory_space<smem>>
    %36 = vector.broadcast %35 : f32 to vector<1x128xf32>
    %37 = arith.addf %34, %36 : vector<1x128xf32>
    %c0_15 = arith.constant 0 : index
    %c0_16 = arith.constant 0 : index
    %38 = vector.load %arg9[%c0_15, %c0_16] : memref<1x128xf32, #tpu.memory_space<vmem>>, vector<1x128xf32>
    tpu.vector_store %arg9[%c0_15, %c0_16], %37 {strides = array<i32>} : memref<1x128xf32, #tpu.memory_space<vmem>>, vector<1x128xf32>,
    return
  }
  func.func @transform_0(%arg0: i32) -> (i32, i32) {
    %c0_i32 = arith.constant 0 : i32
    %c0_i32_0 = arith.constant 0 : i32
    return %c0_i32, %arg0 : i32, i32
  }
  func.func @transform_1(%arg0: i32) -> (i32, i32) {
    %c0_i32 = arith.constant 0 : i32
    %c0_i32_0 = arith.constant 0 : i32
    return %c0_i32, %arg0 : i32, i32
  }
  func.func @transform_2(%arg0: i32) -> (i32, i32) {
    %c0_i32 = arith.constant 0 : i32
    %c0_i32_0 = arith.constant 0 : i32
    %c0_i32_1 = arith.constant 0 : i32
    return %c0_i32, %c0_i32_0 : i32, i32
  }
  func.func @transform_3(%arg0: i32) -> (i32, i32) {
    %c0_i32 = arith.constant 0 : i32
    %c0_i32_0 = arith.constant 0 : i32
    %c0_i32_1 = arith.constant 0 : i32
    return %c0_i32, %c0_i32_0 : i32, i32
  }
  func.func @transform_4(%arg0: i32) -> (i32, i32) {
    %c0_i32 = arith.constant 0 : i32
    %c0_i32_0 = arith.constant 0 : i32
    %c0_i32_1 = arith.constant 0 : i32
    return %c0_i32, %c0_i32_0 : i32, i32
  }
  func.func @transform_5(%arg0: i32) -> i32 {
    %c0_i32 = arith.constant 0 : i32
    %c0_i32_0 = arith.constant 0 : i32
    return %c0_i32 : i32
  }
  func.func @transform_6(%arg0: i32) -> i32 {
    %c0_i32 = arith.constant 0 : i32
    %c0_i32_0 = arith.constant 0 : i32
    return %c0_i32 : i32
  }
  func.func @transform_7(%arg0: i32) -> i32 {
    %c0_i32 = arith.constant 0 : i32
    %c0_i32_0 = arith.constant 0 : i32
    return %c0_i32 : i32
  }
  func.func @transform_8(%arg0: i32) -> (i32, i32) {
    %c0_i32 = arith.constant 0 : i32
    %c0_i32_0 = arith.constant 0 : i32
    return %c0_i32, %arg0 : i32, i32
  }
}

</mosaic_0001>

<llo_original>
// kernel: tpu_custom_call.1
$region0: #{tpu_custom_call.1}
  #allocation0 [shape = 'u32[]', space=smem, size = 0x4, offset = 0x4, fixed_abs, tag = 'smem constant byte address 0x4 - core index']
  #allocation1 [shape = 'u32[144,128]{1,0:T(1,128)}', space=vmem, size = 0x12000, scoped, tag = 'internal scratch']
  #allocation2 [shape = 'f32[1]{0:T(128)S(6)}', space=smem, size = 0x200, scoped, tag = 'scoped memory for tpu_custom_call.1']
  #allocation3 [shape = 'f32[1]{0:T(128)S(6)}', space=smem, size = 0x200, scoped, tag = 'scoped memory for tpu_custom_call.1']
  #allocation4 [shape = 'f32[1]{0:T(128)S(6)}', space=smem, size = 0x200, scoped, tag = 'scoped memory for tpu_custom_call.1']
  %s0 = inlined_call_operand.hbm [shape: s32[2,256], index: 0, kind: input, shape index: {}]
  %s1 = inlined_call_operand.vmem [shape: f32[8,256], index: 1, kind: input, shape index: {}]
  %s2 = inlined_call_operand.hbm [shape: bf16[72,256], index: 2, kind: input, shape index: {}]
  %s3 = inlined_call_operand.hbm [shape: bf16[72,256], index: 3, kind: input, shape index: {}]
  %s4 = inlined_call_operand.vmem [shape: f32[8,1], index: 4, kind: input, shape index: {}]
  %s5 = inlined_call_operand.<no memory space> [shape: f32[1], index: 5, kind: input, shape index: {}]
  %s6 = inlined_call_operand.<no memory space> [shape: f32[1], index: 6, kind: input, shape index: {}]
  %s7 = inlined_call_operand.<no memory space> [shape: f32[1], index: 7, kind: input, shape index: {}]
  %s8 = inlined_call_operand.hbm [shape: f32[1,256], index: 8, kind: output, shape index: {}]
  %s9 = sld [smem:[#allocation0]]
  $region77: #{tpu_custom_call.1} parent=0
    _
  %s11 = ssub.s32 1, %s9
  %s12 = scalar_select 0, %s11, %s9
  %13 = sst [smem:[#allocation2]] %s5
  %14 = sst [smem:[#allocation3]] %s6
  %15 = sst [smem:[#allocation4]] %s7
  $region1: #{tpu_custom_call.1} parent=0
    #allocation5 [shape = 'u8[2048]{0}', space=vmem, size = 0x800, scoped, tag = 'input window, operand 0']
    #allocation6 [shape = 's32[2]{0}', space=sflag, size = 0x8, scoped, tag = 'scoped memory for tpu_custom_call.1']
    #allocation7 [shape = 's32[2]{0}', space=sflag, size = 0x8, scoped, tag = 'scoped memory for tpu_custom_call.1']
    #allocation8 [shape = 'u8[36864]{0}', space=vmem, size = 0x9000, scoped, tag = 'input window, operand 2, single buffered']
    #allocation9 [shape = 's32[1]{0}', space=sflag, size = 0x4, scoped, tag = 'scoped memory for tpu_custom_call.1']
    #allocation10 [shape = 'u8[36864]{0}', space=vmem, size = 0x9000, scoped, tag = 'input window, operand 3, single buffered']
    #allocation11 [shape = 'u8[1024]{0}', space=vmem, size = 0x400, scoped, tag = 'output window, operand 0']
    %16 = vsyncpa [#allocation6], 0
    %s17 = scalar_lea.sflag [#allocation6], 1
    %18 = vsyncpa %s17, 0
    %19 = vsyncpa [#allocation9], 0
    %20 = vsyncpa [#allocation7], 0
    %s21 = scalar_lea.sflag [#allocation7], 1
    %22 = vsyncpa %s21, 0
    loop: start=0, step=1, limit=4
    $region2: #{tpu_custom_call.1} parent=1 // loop_pre_header
      _
    $region3: #{tpu_custom_call.1} parent=1 // loop_header
      %s24 = sphi 0, %s28
      %p25 = scmp.ge.s32.totalorder %s24, 4
      %s34 = sphi 0, %s36
      %s37 = sphi 0, %s34
      %s38 = sphi 0, %s37
      %s54 = sphi 0, %s38
      %s60 = sphi 0, %s62
      %s63 = sphi 0, %s60
      %s64 = sphi 0, %s63
      %s80 = sphi 0, %s64
      %s84 = sphi 0, %s84
      %s86 = sphi 0, %s84
      %s87 = sphi 0, %s86
      %s101 = sphi 0, %s87
      %s105 = sphi 0, %s105
      %s107 = sphi 0, %s105
      %s108 = sphi 0, %s107
      %s122 = sphi 0, %s108
      %s126 = sphi 0, %s126
      %s128 = sphi 0, %s126
      %s129 = sphi 0, %s128
      %s143 = sphi 0, %s129
      %s147 = sphi 0, %s147
      %s149 = sphi 0, %s147
      %s150 = sphi 0, %s149
      %s164 = sphi 0, %s150
      %s168 = sphi 0, %s168
      %s170 = sphi 0, %s168
      %s171 = sphi 0, %s170
      %s185 = sphi 0, %s171
      %s189 = sphi 0, %s189
      %s191 = sphi 0, %s189
      %s192 = sphi 0, %s191
      %s206 = sphi 0, %s192
      %s212 = sphi 0, %s214
      %s215 = sphi 0, %s212
      %s216 = sphi 0, %s215
      %s232 = sphi 0, %s216
    $region4: #{tpu_custom_call.1} parent=1 // loop_header_branch
      %27 = sbr.rel (%p25) target = $region8
    $region5: #{tpu_custom_call.1} parent=1 // loop_body
      %s29 = ssub.s32 %s24, 1
      %s30 = ssub.s32 %s24, 2
      %s31 = sadd.s32 %s24, 1
      %s32 = ssub.s32 %s24, %s31
      %p33 = scmp.eq.s32.totalorder %s32, 0
      %s35 = sadd.s32 %s34, 1
      %s36 = scalar_select %p33, %s34, %s35
      %p39 = pneg %p33
      %p40 = scmp.eq.s32.totalorder %s24, 1
      %p41 = por %p39, %p40
      %p42 = scmp.ne.s32.totalorder %s34, %s37
      %p43 = scmp.eq.s32.totalorder %s24, 0
      %p44 = por %p42, %p43
      %p45 = scmp.ne.s32.totalorder %s34, %s37
      %p46 = scmp.eq.s32.totalorder %s29, 1
      %p47 = por %p45, %p46
      %p48 = scmp.ne.s32.totalorder %s37, %s38
      %p49 = scmp.eq.s32.totalorder %s29, 0
      %p50 = por %p48, %p49
      %p51 = scmp.ne.s32.totalorder %s37, %s38
      %p52 = scmp.eq.s32.totalorder %s30, 1
      %p53 = por %p51, %p52
      %p55 = scmp.ne.s32.totalorder %s38, %s54
      %p56 = scmp.eq.s32.totalorder %s30, 0
      %p57 = por %p55, %p56
      %s58 = ssub.s32 %s24, %s31
      %p59 = scmp.eq.s32.totalorder %s58, 0
      %s61 = sadd.s32 %s60, 1
      %s62 = scalar_select %p59, %s60, %s61
      %p65 = pneg %p59
      %p66 = scmp.eq.s32.totalorder %s24, 1
      %p67 = por %p65, %p66
      %p68 = scmp.ne.s32.totalorder %s60, %s63
      %p69 = scmp.eq.s32.totalorder %s24, 0
      %p70 = por %p68, %p69
      %p71 = scmp.ne.s32.totalorder %s60, %s63
      %p72 = scmp.eq.s32.totalorder %s29, 1
      %p73 = por %p71, %p72
      %p74 = scmp.ne.s32.totalorder %s63, %s64
      %p75 = scmp.eq.s32.totalorder %s29, 0
      %p76 = por %p74, %p75
      %p77 = scmp.ne.s32.totalorder %s63, %s64
      %p78 = scmp.eq.s32.totalorder %s30, 1
      %p79 = por %p77, %p78
      %p81 = scmp.ne.s32.totalorder %s64, %s80
      %p82 = scmp.eq.s32.totalorder %s30, 0
      %p83 = por %p81, %p82
      %s85 = sadd.s32 %s84, 1
      %p88 = scmp.eq.s32.totalorder %s24, 1
      %p89 = scmp.ne.s32.totalorder %s84, %s86
      %p90 = scmp.eq.s32.totalorder %s24, 0
      %p91 = por %p89, %p90
      %p92 = scmp.ne.s32.totalorder %s84, %s86
      %p93 = scmp.eq.s32.totalorder %s29, 1
      %p94 = por %p92, %p93
      %p95 = scmp.ne.s32.totalorder %s86, %s87
      %p96 = scmp.eq.s32.totalorder %s29, 0
      %p97 = por %p95, %p96
      %p98 = scmp.ne.s32.totalorder %s86, %s87
      %p99 = scmp.eq.s32.totalorder %s30, 1
      %p100 = por %p98, %p99
      %p102 = scmp.ne.s32.totalorder %s87, %s101
      %p103 = scmp.eq.s32.totalorder %s30, 0
      %p104 = por %p102, %p103
      %s106 = sadd.s32 %s105, 1
      %p109 = scmp.eq.s32.totalorder %s24, 1
      %p110 = scmp.ne.s32.totalorder %s105, %s107
      %p111 = scmp.eq.s32.totalorder %s24, 0
      %p112 = por %p110, %p111
      %p113 = scmp.ne.s32.totalorder %s105, %s107
      %p114 = scmp.eq.s32.totalorder %s29, 1
      %p115 = por %p113, %p114
      %p116 = scmp.ne.s32.totalorder %s107, %s108
      %p117 = scmp.eq.s32.totalorder %s29, 0
      %p118 = por %p116, %p117
      %p119 = scmp.ne.s32.totalorder %s107, %s108
      %p120 = scmp.eq.s32.totalorder %s30, 1
      %p121 = por %p119, %p120
      %p123 = scmp.ne.s32.totalorder %s108, %s122
      %p124 = scmp.eq.s32.totalorder %s30, 0
      %p125 = por %p123, %p124
      %s127 = sadd.s32 %s126, 1
      %p130 = scmp.eq.s32.totalorder %s24, 1
      %p131 = scmp.ne.s32.totalorder %s126, %s128
      %p132 = scmp.eq.s32.totalorder %s24, 0
      %p133 = por %p131, %p132
      %p134 = scmp.ne.s32.totalorder %s126, %s128
      %p135 = scmp.eq.s32.totalorder %s29, 1
      %p136 = por %p134, %p135
      %p137 = scmp.ne.s32.totalorder %s128, %s129
      %p138 = scmp.eq.s32.totalorder %s29, 0
      %p139 = por %p137, %p138
      %p140 = scmp.ne.s32.totalorder %s128, %s129
      %p141 = scmp.eq.s32.totalorder %s30, 1
      %p142 = por %p140, %p141
      %p144 = scmp.ne.s32.totalorder %s129, %s143
      %p145 = scmp.eq.s32.totalorder %s30, 0
      %p146 = por %p144, %p145
      %s148 = sadd.s32 %s147, 1
      %p151 = scmp.eq.s32.totalorder %s24, 1
      %p152 = scmp.ne.s32.totalorder %s147, %s149
      %p153 = scmp.eq.s32.totalorder %s24, 0
      %p154 = por %p152, %p153
      %p155 = scmp.ne.s32.totalorder %s147, %s149
      %p156 = scmp.eq.s32.totalorder %s29, 1
      %p157 = por %p155, %p156
      %p158 = scmp.ne.s32.totalorder %s149, %s150
      %p159 = scmp.eq.s32.totalorder %s29, 0
      %p160 = por %p158, %p159
      %p161 = scmp.ne.s32.totalorder %s149, %s150
      %p162 = scmp.eq.s32.totalorder %s30, 1
      %p163 = por %p161, %p162
      %p165 = scmp.ne.s32.totalorder %s150, %s164
      %p166 = scmp.eq.s32.totalorder %s30, 0
      %p167 = por %p165, %p166
      %s169 = sadd.s32 %s168, 1
      %p172 = scmp.eq.s32.totalorder %s24, 1
      %p173 = scmp.ne.s32.totalorder %s168, %s170
      %p174 = scmp.eq.s32.totalorder %s24, 0
      %p175 = por %p173, %p174
      %p176 = scmp.ne.s32.totalorder %s168, %s170
      %p177 = scmp.eq.s32.totalorder %s29, 1
      %p178 = por %p176, %p177
      %p179 = scmp.ne.s32.totalorder %s170, %s171
      %p180 = scmp.eq.s32.totalorder %s29, 0
      %p181 = por %p179, %p180
      %p182 = scmp.ne.s32.totalorder %s170, %s171
      %p183 = scmp.eq.s32.totalorder %s30, 1
      %p184 = por %p182, %p183
      %p186 = scmp.ne.s32.totalorder %s171, %s185
      %p187 = scmp.eq.s32.totalorder %s30, 0
      %p188 = por %p186, %p187
      %s190 = sadd.s32 %s189, 1
      %p193 = scmp.eq.s32.totalorder %s24, 1
      %p194 = scmp.ne.s32.totalorder %s189, %s191
      %p195 = scmp.eq.s32.totalorder %s24, 0
      %p196 = por %p194, %p195
      %p197 = scmp.ne.s32.totalorder %s189, %s191
      %p198 = scmp.eq.s32.totalorder %s29, 1
      %p199 = por %p197, %p198
      %p200 = scmp.ne.s32.totalorder %s191, %s192
      %p201 = scmp.eq.s32.totalorder %s29, 0
      %p202 = por %p200, %p201
      %p203 = scmp.ne.s32.totalorder %s191, %s192
      %p204 = scmp.eq.s32.totalorder %s30, 1
      %p205 = por %p203, %p204
      %p207 = scmp.ne.s32.totalorder %s192, %s206
      %p208 = scmp.eq.s32.totalorder %s30, 0
      %p209 = por %p207, %p208
      %s210 = ssub.s32 %s24, %s31
      %p211 = scmp.eq.s32.totalorder %s210, 0
      %s213 = sadd.s32 %s212, 1
      %s214 = scalar_select %p211, %s212, %s213
      %p217 = pneg %p211
      %p218 = scmp.eq.s32.totalorder %s24, 1
      %p219 = por %p217, %p218
      %p220 = scmp.ne.s32.totalorder %s212, %s215
      %p221 = scmp.eq.s32.totalorder %s24, 0
      %p222 = por %p220, %p221
      %p223 = scmp.ne.s32.totalorder %s212, %s215
      %p224 = scmp.eq.s32.totalorder %s29, 1
      %p225 = por %p223, %p224
      %p226 = scmp.ne.s32.totalorder %s215, %s216
      %p227 = scmp.eq.s32.totalorder %s29, 0
      %p228 = por %p226, %p227
      %p229 = scmp.ne.s32.totalorder %s215, %s216
      %p230 = scmp.eq.s32.totalorder %s30, 1
      %p231 = por %p229, %p230
      %p233 = scmp.ne.s32.totalorder %s216, %s232
      %p234 = scmp.eq.s32.totalorder %s30, 0
      %p235 = por %p233, %p234
      %p236 = scmp.le.s32.totalorder 1, %s24
      %p237 = scmp.lt.s32.totalorder %s24, 3
      %p238 = pnand %p236, %p237
      %p239 = pneg %p238
      // Predicated region
      $region9: #{tpu_custom_call.1} parent=5 // pred_check
        _
      $region10: #{tpu_custom_call.1} parent=5 // pred_check_branch
        %241 = sbr.rel (%p238) target = $region12
      $region11: #{tpu_custom_call.1} parent=5 // pred_region
        %s242 = ssub.s32 %s24, 1
        // Predicated region
        $region13: #{tpu_custom_call.1} parent=11 // pred_check
          %p243 = pneg %p97
        $region14: #{tpu_custom_call.1} parent=11 // pred_check_branch
          %245 = sbr.rel (%p243) target = $region16
        $region15: #{tpu_custom_call.1} parent=11 // pred_region
          %s247 = ssub.s32 1152, 1152
          %248 = vsyncadd [#allocation9], %s247
          %s249 = sshll.u32 [#allocation8], 4
          %s250 = int_to_ptr.vmem [resolvable:$true] %s249
          %255 = dma.hbm_to_vmem [thread:$0]  %s2, 1152, %s250, [#allocation9], 128, 128, 8
        $region16: #{tpu_custom_call.1} parent=11 // pred_fallthru
          _
        // Predicated region
        $region17: #{tpu_custom_call.1} parent=11 // pred_check
          %p256 = pneg %p118
        $region18: #{tpu_custom_call.1} parent=11 // pred_check_branch
          %258 = sbr.rel (%p256) target = $region20
        $region19: #{tpu_custom_call.1} parent=11 // pred_region
          %s260 = ssub.s32 1152, 1152
          %261 = vsyncadd [#allocation9], %s260
          %s262 = sshll.u32 [#allocation10], 4
          %s263 = int_to_ptr.vmem [resolvable:$true] %s262
          %268 = dma.hbm_to_vmem [thread:$0]  %s3, 1152, %s263, [#allocation9], 128, 128, 8
        $region20: #{tpu_custom_call.1} parent=11 // pred_fallthru
          _
        // Predicated region
        $region21: #{tpu_custom_call.1} parent=11 // pred_check
          %p269 = pneg %p139
        $region22: #{tpu_custom_call.1} parent=11 // pred_check_branch
          %271 = sbr.rel (%p269) target = $region24
        $region23: #{tpu_custom_call.1} parent=11 // pred_region
          _
        $region24: #{tpu_custom_call.1} parent=11 // pred_fallthru
          _
        // Predicated region
        $region25: #{tpu_custom_call.1} parent=11 // pred_check
          %p272 = pneg %p160
        $region26: #{tpu_custom_call.1} parent=11 // pred_check_branch
          %274 = sbr.rel (%p272) target = $region28
        $region27: #{tpu_custom_call.1} parent=11 // pred_region
          _
        $region28: #{tpu_custom_call.1} parent=11 // pred_fallthru
          _
        // Predicated region
        $region29: #{tpu_custom_call.1} parent=11 // pred_check
          %p275 = pneg %p181
        $region30: #{tpu_custom_call.1} parent=11 // pred_check_branch
          %277 = sbr.rel (%p275) target = $region32
        $region31: #{tpu_custom_call.1} parent=11 // pred_region
          _
        $region32: #{tpu_custom_call.1} parent=11 // pred_fallthru
          _
        // Predicated region
        $region33: #{tpu_custom_call.1} parent=11 // pred_check
          %p278 = pneg %p202
        $region34: #{tpu_custom_call.1} parent=11 // pred_check_branch
          %280 = sbr.rel (%p278) target = $region36
        $region35: #{tpu_custom_call.1} parent=11 // pred_region
          _
        $region36: #{tpu_custom_call.1} parent=11 // pred_fallthru
          _
      $region12: #{tpu_custom_call.1} parent=5 // pred_fallthru
        _
      %p281 = scmp.lt.s32.totalorder %s24, 2
      // Predicated region
      $region37: #{tpu_custom_call.1} parent=5 // pred_check
        %p282 = pneg %p281
      $region38: #{tpu_custom_call.1} parent=5 // pred_check_branch
        %284 = sbr.rel (%p282) target = $region40
      $region39: #{tpu_custom_call.1} parent=5 // pred_region
        // Predicated region
        $region41: #{tpu_custom_call.1} parent=39 // pred_check
          %p285 = pneg %p44
        $region42: #{tpu_custom_call.1} parent=39 // pred_check_branch
          %287 = sbr.rel (%p285) target = $region44
        $region43: #{tpu_custom_call.1} parent=39 // pred_region
          %s288 = sand.u32 %s34, 1
          %s289 = scalar_lea.sflag [#allocation6], %s288
          %s290 = sand.u32 %s34, 1
          %s291 = smul.addr %s290, 2
          %s292 = scalar_lea.vmem [#allocation5], %s291
          %s294 = ssub.s32 32, 32
          %295 = vsyncadd %s289, %s294
          %s296 = smul.addr %s24, 32
          %s297 = scalar_lea.hbm %s0, %s296
          %s299 = sshll.u32 %s292, 4
          %s300 = int_to_ptr.vmem [resolvable:$true] %s299
          %302 = dma.hbm_to_vmem [thread:$0]  %s297, 32, %s300, %s289
        $region44: #{tpu_custom_call.1} parent=39 // pred_fallthru
          _
        // Predicated region
        $region45: #{tpu_custom_call.1} parent=39 // pred_check
          %p303 = pneg %p70
        $region46: #{tpu_custom_call.1} parent=39 // pred_check_branch
          %305 = sbr.rel (%p303) target = $region48
        $region47: #{tpu_custom_call.1} parent=39 // pred_region
          %p306 = scmp.lt.s32.totalorder %s24, 1
          %s307 = scalar_select %p306, %s24, 1
          %s308 = smul.addr %s307, 8
          %s309 = scalar_lea.vmem %s1, %s308
        $region48: #{tpu_custom_call.1} parent=39 // pred_fallthru
          _
      $region40: #{tpu_custom_call.1} parent=5 // pred_fallthru
        _
      %p310 = scmp.le.s32.totalorder 1, %s24
      %p311 = scmp.lt.s32.totalorder %s24, 3
      %p312 = pnand %p310, %p311
      %p313 = pneg %p312
      // Predicated region
      $region49: #{tpu_custom_call.1} parent=5 // pred_check
        _
      $region50: #{tpu_custom_call.1} parent=5 // pred_check_branch
        %315 = sbr.rel (%p312) target = $region52
      $region51: #{tpu_custom_call.1} parent=5 // pred_region
        %s316 = ssub.s32 %s24, 1
        %s317 = sand.u32 %s37, 1
        %s318 = scalar_lea.sflag [#allocation6], %s317
        %s319 = sand.u32 %s37, 1
        %s320 = smul.addr %s319, 2
        %s321 = scalar_lea.vmem [#allocation5], %s320
        // Predicated region
        $region53: #{tpu_custom_call.1} parent=51 // pred_check
          %p322 = pneg %p50
        $region54: #{tpu_custom_call.1} parent=51 // pred_check_branch
          %324 = sbr.rel (%p322) target = $region56
        $region55: #{tpu_custom_call.1} parent=51 // pred_region
          %325 = dma.done %s318, 32
        $region56: #{tpu_custom_call.1} parent=51 // pred_fallthru
          _
        // Predicated region
        $region57: #{tpu_custom_call.1} parent=51 // pred_check
          %p326 = pneg %p97
        $region58: #{tpu_custom_call.1} parent=51 // pred_check_branch
          %328 = sbr.rel (%p326) target = $region60
        $region59: #{tpu_custom_call.1} parent=51 // pred_region
          %329 = dma.done [#allocation9], 1152
        $region60: #{tpu_custom_call.1} parent=51 // pred_fallthru
          _
        // Predicated region
        $region61: #{tpu_custom_call.1} parent=51 // pred_check
          %p330 = pneg %p118
        $region62: #{tpu_custom_call.1} parent=51 // pred_check_branch
          %332 = sbr.rel (%p330) target = $region64
        $region63: #{tpu_custom_call.1} parent=51 // pred_region
          %333 = dma.done [#allocation9], 1152
        $region64: #{tpu_custom_call.1} parent=51 // pred_fallthru
          _
        %s334 = sand.u32 %s37, 1
        %s335 = scalar_lea.sflag [#allocation6], %s334
        %s336 = sand.u32 %s37, 1
        %s337 = smul.addr %s336, 2
        %s338 = scalar_lea.vmem [#allocation5], %s337
        %p339 = pneg %p50
        %p340 = pneg %p47
        %p341 = scmp.lt.s32.totalorder %s29, 1
        %s342 = scalar_select %p341, %s29, 1
        %s343 = smul.addr %s342, 8
        %s344 = scalar_lea.vmem %s1, %s343
        %p345 = pneg %p76
        %p346 = pneg %p73
        %p347 = pneg %p97
        %p348 = pneg %p94
        %p349 = pneg %p118
        %p350 = pneg %p115
        %p351 = pneg %p139
        %p352 = pneg %p136
        %p353 = pneg %p160
        %p354 = pneg %p157
        %p355 = pneg %p181
        %p356 = pneg %p178
        %p357 = pneg %p202
        %p358 = pneg %p199
        %p359 = pneg %p228
        %p360 = pneg %p225
        %s361 = sand.u32 %s215, 1
        %s362 = scalar_lea.sflag [#allocation7], %s361
        %s363 = sand.u32 %s215, 1
        %s364 = scalar_lea.vmem [#allocation11], %s363
        %p365 = scmp.lt.s32.totalorder %s29, 1
        %s366 = scalar_select %p365, %s29, 1
        %s367 = smul.addr %s366, 8
        %s368 = scalar_lea.vmem %s1, %s367
        %v370 = vld [vmem:[%s321] sm:$0x3]
        %v371 = vlaneseq
        %v372 = vshrl.u32 %v371, 7
        %v373 = vadd.s32 %v372, 8
        %v374 = vadd.s32 %v372, 16
        %v375 = vadd.s32 %v372, 24
        %v376 = vadd.s32 %v372, 32
        %v377 = vadd.s32 %v372, 40
        %v378 = vadd.s32 %v372, 48
        %v379 = vadd.s32 %v372, 56
        %v380 = vadd.s32 %v372, 64
        %v381 = vadd.s32 %v372, 72
        %v382 = vadd.s32 %v372, 80
        %v383 = vadd.s32 %v372, 88
        %v384 = vadd.s32 %v372, 96
        %v385 = vadd.s32 %v372, 104
        %v386 = vadd.s32 %v372, 112
        %v387 = vadd.s32 %v372, 120
        %v388 = vadd.s32 %v372, 128
        %v389 = vadd.s32 %v372, 136
        %v390 = vadd.s32 %v372, 144
        %v391 = vadd.s32 %v372, 152
        %v392 = vadd.s32 %v372, 160
        %v393 = vadd.s32 %v372, 168
        %v394 = vadd.s32 %v372, 176
        %v395 = vadd.s32 %v372, 184
        %v396 = vadd.s32 %v372, 192
        %v397 = vadd.s32 %v372, 200
        %v398 = vadd.s32 %v372, 208
        %v399 = vadd.s32 %v372, 216
        %v400 = vadd.s32 %v372, 224
        %v401 = vadd.s32 %v372, 232
        %v402 = vadd.s32 %v372, 240
        %v403 = vadd.s32 %v372, 248
        %v404 = vlaneseq
        %v405 = vshrl.u32 %v404, 7
        %v406 = vsub.s32 0, %v405
        %v407 = vrot.slane %v370, %v406
        %vm408 = vcmp.eq.s32.totalorder %v372, %v407
        %vm409 = vcmp.eq.s32.totalorder %v373, %v407
        %vm410 = vcmp.eq.s32.totalorder %v374, %v407
        %vm411 = vcmp.eq.s32.totalorder %v375, %v407
        %vm412 = vcmp.eq.s32.totalorder %v376, %v407
        %vm413 = vcmp.eq.s32.totalorder %v377, %v407
        %vm414 = vcmp.eq.s32.totalorder %v378, %v407
        %vm415 = vcmp.eq.s32.totalorder %v379, %v407
        %vm416 = vcmp.eq.s32.totalorder %v380, %v407
        %vm417 = vcmp.eq.s32.totalorder %v381, %v407
        %vm418 = vcmp.eq.s32.totalorder %v382, %v407
        %vm419 = vcmp.eq.s32.totalorder %v383, %v407
        %vm420 = vcmp.eq.s32.totalorder %v384, %v407
        %vm421 = vcmp.eq.s32.totalorder %v385, %v407
        %vm422 = vcmp.eq.s32.totalorder %v386, %v407
        %vm423 = vcmp.eq.s32.totalorder %v387, %v407
        %vm424 = vcmp.eq.s32.totalorder %v388, %v407
        %vm425 = vcmp.eq.s32.totalorder %v389, %v407
        %vm426 = vcmp.eq.s32.totalorder %v390, %v407
        %vm427 = vcmp.eq.s32.totalorder %v391, %v407
        %vm428 = vcmp.eq.s32.totalorder %v392, %v407
        %vm429 = vcmp.eq.s32.totalorder %v393, %v407
        %vm430 = vcmp.eq.s32.totalorder %v394, %v407
        %vm431 = vcmp.eq.s32.totalorder %v395, %v407
        %vm432 = vcmp.eq.s32.totalorder %v396, %v407
        %vm433 = vcmp.eq.s32.totalorder %v397, %v407
        %vm434 = vcmp.eq.s32.totalorder %v398, %v407
        %vm435 = vcmp.eq.s32.totalorder %v399, %v407
        %vm436 = vcmp.eq.s32.totalorder %v400, %v407
        %vm437 = vcmp.eq.s32.totalorder %v401, %v407
        %vm438 = vcmp.eq.s32.totalorder %v402, %v407
        %vm439 = vcmp.eq.s32.totalorder %v403, %v407
        %v440 = vsel %vm408, 1, 0
        %v441 = vsel %vm409, 1, 0
        %v442 = vsel %vm410, 1, 0
        %v443 = vsel %vm411, 1, 0
        %v444 = vsel %vm412, 1, 0
        %v445 = vsel %vm413, 1, 0
        %v446 = vsel %vm414, 1, 0
        %v447 = vsel %vm415, 1, 0
        %v448 = vsel %vm416, 1, 0
        %v449 = vsel %vm417, 1, 0
        %v450 = vsel %vm418, 1, 0
        %v451 = vsel %vm419, 1, 0
        %v452 = vsel %vm420, 1, 0
        %v453 = vsel %vm421, 1, 0
        %v454 = vsel %vm422, 1, 0
        %v455 = vsel %vm423, 1, 0
        %v456 = vsel %vm424, 1, 0
        %v457 = vsel %vm425, 1, 0
        %v458 = vsel %vm426, 1, 0
        %v459 = vsel %vm427, 1, 0
        %v460 = vsel %vm428, 1, 0
        %v461 = vsel %vm429, 1, 0
        %v462 = vsel %vm430, 1, 0
        %v463 = vsel %vm431, 1, 0
        %v464 = vsel %vm432, 1, 0
        %v465 = vsel %vm433, 1, 0
        %v466 = vsel %vm434, 1, 0
        %v467 = vsel %vm435, 1, 0
        %v468 = vsel %vm436, 1, 0
        %v469 = vsel %vm437, 1, 0
        %v470 = vsel %vm438, 1, 0
        %v471 = vsel %vm439, 1, 0
        %v472 = vcvt.s32.f32 %v440
        %v473 = vcvt.s32.f32 %v441
        %v474 = vcvt.s32.f32 %v442
        %v475 = vcvt.s32.f32 %v443
        %v476 = vcvt.s32.f32 %v444
        %v477 = vcvt.s32.f32 %v445
        %v478 = vcvt.s32.f32 %v446
        %v479 = vcvt.s32.f32 %v447
        %v480 = vcvt.s32.f32 %v448
        %v481 = vcvt.s32.f32 %v449
        %v482 = vcvt.s32.f32 %v450
        %v483 = vcvt.s32.f32 %v451
        %v484 = vcvt.s32.f32 %v452
        %v485 = vcvt.s32.f32 %v453
        %v486 = vcvt.s32.f32 %v454
        %v487 = vcvt.s32.f32 %v455
        %v488 = vcvt.s32.f32 %v456
        %v489 = vcvt.s32.f32 %v457
        %v490 = vcvt.s32.f32 %v458
        %v491 = vcvt.s32.f32 %v459
        %v492 = vcvt.s32.f32 %v460
        %v493 = vcvt.s32.f32 %v461
        %v494 = vcvt.s32.f32 %v462
        %v495 = vcvt.s32.f32 %v463
        %v496 = vcvt.s32.f32 %v464
        %v497 = vcvt.s32.f32 %v465
        %v498 = vcvt.s32.f32 %v466
        %v499 = vcvt.s32.f32 %v467
        %v500 = vcvt.s32.f32 %v468
        %v501 = vcvt.s32.f32 %v469
        %v502 = vcvt.s32.f32 %v470
        %v503 = vcvt.s32.f32 %v471
        %v504 = vpack.c.bf16 %v473, %v472
        %v505 = vpack.c.bf16 %v475, %v474
        %v506 = vpack.c.bf16 %v477, %v476
        %v507 = vpack.c.bf16 %v479, %v478
        %v508 = vpack.c.bf16 %v481, %v480
        %v509 = vpack.c.bf16 %v483, %v482
        %v510 = vpack.c.bf16 %v485, %v484
        %v511 = vpack.c.bf16 %v487, %v486
        %v512 = vpack.c.bf16 %v489, %v488
        %v513 = vpack.c.bf16 %v491, %v490
        %v514 = vpack.c.bf16 %v493, %v492
        %v515 = vpack.c.bf16 %v495, %v494
        %v516 = vpack.c.bf16 %v497, %v496
        %v517 = vpack.c.bf16 %v499, %v498
        %v518 = vpack.c.bf16 %v501, %v500
        %v519 = vpack.c.bf16 %v503, %v502
        %v520 = vlaneseq
        %v521 = vshrl.u32 %v520, 7
        %v522 = vsub.s32 1, %v521
        %v523 = vrot.slane %v370, %v522
        %vm524 = vcmp.eq.s32.totalorder %v372, %v523
        %vm525 = vcmp.eq.s32.totalorder %v373, %v523
        %vm526 = vcmp.eq.s32.totalorder %v374, %v523
        %vm527 = vcmp.eq.s32.totalorder %v375, %v523
        %vm528 = vcmp.eq.s32.totalorder %v376, %v523
        %vm529 = vcmp.eq.s32.totalorder %v377, %v523
        %vm530 = vcmp.eq.s32.totalorder %v378, %v523
        %vm531 = vcmp.eq.s32.totalorder %v379, %v523
        %vm532 = vcmp.eq.s32.totalorder %v380, %v523
        %vm533 = vcmp.eq.s32.totalorder %v381, %v523
        %vm534 = vcmp.eq.s32.totalorder %v382, %v523
        %vm535 = vcmp.eq.s32.totalorder %v383, %v523
        %vm536 = vcmp.eq.s32.totalorder %v384, %v523
        %vm537 = vcmp.eq.s32.totalorder %v385, %v523
        %vm538 = vcmp.eq.s32.totalorder %v386, %v523
        %vm539 = vcmp.eq.s32.totalorder %v387, %v523
        %vm540 = vcmp.eq.s32.totalorder %v388, %v523
        %vm541 = vcmp.eq.s32.totalorder %v389, %v523
        %vm542 = vcmp.eq.s32.totalorder %v390, %v523
        %vm543 = vcmp.eq.s32.totalorder %v391, %v523
        %vm544 = vcmp.eq.s32.totalorder %v392, %v523
        %vm545 = vcmp.eq.s32.totalorder %v393, %v523
        %vm546 = vcmp.eq.s32.totalorder %v394, %v523
        %vm547 = vcmp.eq.s32.totalorder %v395, %v523
        %vm548 = vcmp.eq.s32.totalorder %v396, %v523
        %vm549 = vcmp.eq.s32.totalorder %v397, %v523
        %vm550 = vcmp.eq.s32.totalorder %v398, %v523
        %vm551 = vcmp.eq.s32.totalorder %v399, %v523
        %vm552 = vcmp.eq.s32.totalorder %v400, %v523
        %vm553 = vcmp.eq.s32.totalorder %v401, %v523
        %vm554 = vcmp.eq.s32.totalorder %v402, %v523
        %vm555 = vcmp.eq.s32.totalorder %v403, %v523
        %v556 = vsel %vm524, 1, 0
        %v557 = vsel %vm525, 1, 0
        %v558 = vsel %vm526, 1, 0
        %v559 = vsel %vm527, 1, 0
        %v560 = vsel %vm528, 1, 0
        %v561 = vsel %vm529, 1, 0
        %v562 = vsel %vm530, 1, 0
        %v563 = vsel %vm531, 1, 0
        %v564 = vsel %vm532, 1, 0
        %v565 = vsel %vm533, 1, 0
        %v566 = vsel %vm534, 1, 0
        %v567 = vsel %vm535, 1, 0
        %v568 = vsel %vm536, 1, 0
        %v569 = vsel %vm537, 1, 0
        %v570 = vsel %vm538, 1, 0
        %v571 = vsel %vm539, 1, 0
        %v572 = vsel %vm540, 1, 0
        %v573 = vsel %vm541, 1, 0
        %v574 = vsel %vm542, 1, 0
        %v575 = vsel %vm543, 1, 0
        %v576 = vsel %vm544, 1, 0
        %v577 = vsel %vm545, 1, 0
        %v578 = vsel %vm546, 1, 0
        %v579 = vsel %vm547, 1, 0
        %v580 = vsel %vm548, 1, 0
        %v581 = vsel %vm549, 1, 0
        %v582 = vsel %vm550, 1, 0
        %v583 = vsel %vm551, 1, 0
        %v584 = vsel %vm552, 1, 0
        %v585 = vsel %vm553, 1, 0
        %v586 = vsel %vm554, 1, 0
        %v587 = vsel %vm555, 1, 0
        %v588 = vcvt.s32.f32 %v556
        %v589 = vcvt.s32.f32 %v557
        %v590 = vcvt.s32.f32 %v558
        %v591 = vcvt.s32.f32 %v559
        %v592 = vcvt.s32.f32 %v560
        %v593 = vcvt.s32.f32 %v561
        %v594 = vcvt.s32.f32 %v562
        %v595 = vcvt.s32.f32 %v563
        %v596 = vcvt.s32.f32 %v564
        %v597 = vcvt.s32.f32 %v565
        %v598 = vcvt.s32.f32 %v566
        %v599 = vcvt.s32.f32 %v567
        %v600 = vcvt.s32.f32 %v568
        %v601 = vcvt.s32.f32 %v569
        %v602 = vcvt.s32.f32 %v570
        %v603 = vcvt.s32.f32 %v571
        %v604 = vcvt.s32.f32 %v572
        %v605 = vcvt.s32.f32 %v573
        %v606 = vcvt.s32.f32 %v574
        %v607 = vcvt.s32.f32 %v575
        %v608 = vcvt.s32.f32 %v576
        %v609 = vcvt.s32.f32 %v577
        %v610 = vcvt.s32.f32 %v578
        %v611 = vcvt.s32.f32 %v579
        %v612 = vcvt.s32.f32 %v580
        %v613 = vcvt.s32.f32 %v581
        %v614 = vcvt.s32.f32 %v582
        %v615 = vcvt.s32.f32 %v583
        %v616 = vcvt.s32.f32 %v584
        %v617 = vcvt.s32.f32 %v585
        %v618 = vcvt.s32.f32 %v586
        %v619 = vcvt.s32.f32 %v587
        %v620 = vpack.c.bf16 %v589, %v588
        %v621 = vpack.c.bf16 %v591, %v590
        %v622 = vpack.c.bf16 %v593, %v592
        %v623 = vpack.c.bf16 %v595, %v594
        %v624 = vpack.c.bf16 %v597, %v596
        %v625 = vpack.c.bf16 %v599, %v598
        %v626 = vpack.c.bf16 %v601, %v600
        %v627 = vpack.c.bf16 %v603, %v602
        %v628 = vpack.c.bf16 %v605, %v604
        %v629 = vpack.c.bf16 %v607, %v606
        %v630 = vpack.c.bf16 %v609, %v608
        %v631 = vpack.c.bf16 %v611, %v610
        %v632 = vpack.c.bf16 %v613, %v612
        %v633 = vpack.c.bf16 %v615, %v614
        %v634 = vpack.c.bf16 %v617, %v616
        %v635 = vpack.c.bf16 %v619, %v618
        %v636 = vld [vmem:[#allocation8] sm:$0xff]
        %v637 = vld [vmem:[#allocation8 + $0x8] sm:$0xff]
        %v638 = vld [vmem:[#allocation8 + $0x10] sm:$0xff]
        %v639 = vld [vmem:[#allocation8 + $0x18] sm:$0xff]
        %v640 = vld [vmem:[#allocation8 + $0x20] sm:$0xff]
        %v641 = vld [vmem:[#allocation8 + $0x28] sm:$0xff]
        %v642 = vld [vmem:[#allocation8 + $0x30] sm:$0xff]
        %v643 = vld [vmem:[#allocation8 + $0x38] sm:$0xff]
        %v644 = vld [vmem:[#allocation8 + $0x40] sm:$0xff]
        %v654 = vunpack.c.l.b16 %v636
        %v655 = vunpack.c.h.b16 %v636
        %v656 = vunpack.c.l.b16 %v637
        %v657 = vunpack.c.h.b16 %v637
        %v658 = vunpack.c.l.b16 %v638
        %v659 = vunpack.c.h.b16 %v638
        %v660 = vunpack.c.l.b16 %v639
        %v661 = vunpack.c.h.b16 %v639
        %v662 = vunpack.c.l.b16 %v640
        %v663 = vunpack.c.h.b16 %v640
        %v664 = vunpack.c.l.b16 %v641
        %v665 = vunpack.c.h.b16 %v641
        %v666 = vunpack.c.l.b16 %v642
        %v667 = vunpack.c.h.b16 %v642
        %v668 = vunpack.c.l.b16 %v643
        %v669 = vunpack.c.h.b16 %v643
        %v670 = vunpack.c.l.b16 %v644
        %v671 = vunpack.c.h.b16 %v644
        %v672 = vpack.c.b16 %v656, %v654
        %v673 = vpack.c.b16 %v657, %v655
        %v674 = vpack.c.b16 %v660, %v658
        %v675 = vpack.c.b16 %v661, %v659
        %v676 = vpack.c.b16 %v664, %v662
        %v677 = vpack.c.b16 %v665, %v663
        %v678 = vpack.c.b16 %v668, %v666
        %v679 = vpack.c.b16 %v669, %v667
        %v680 = vpack.c.b16 %v670, %v670
        %v681 = vpack.c.b16 %v671, %v671
        %692 = vmatprep.subr.bf16.mxu0 0
        %693 = vmatpush1.bf16.msra.mxu0 %v511
        %694 = vmatprep.subr.bf16.mxu0 0
        %695 = vmatpush1.bf16.msra.mxu0 %v510
        %696 = vmatprep.subr.bf16.mxu0 0
        %697 = vmatpush1.bf16.msra.mxu0 %v509
        %698 = vmatprep.subr.bf16.mxu0 0
        %699 = vmatpush1.bf16.msra.mxu0 %v508
        %700 = vmatprep.subr.bf16.mxu0 0
        %701 = vmatpush1.bf16.msra.mxu0 %v507
        %702 = vmatprep.subr.bf16.mxu0 0
        %703 = vmatpush1.bf16.msra.mxu0 %v506
        %704 = vmatprep.subr.bf16.mxu0 0
        %705 = vmatpush1.bf16.msra.mxu0 %v505
        %706 = vmatprep.subr.bf16.mxu0 0
        %707 = vmatpush1.bf16.msra.mxu0 %v504
        %708 = vmatprep.subr.bf16.mxu0 0
        %709 = vmatpush2.bf16.msra.mxu0 %v519
        %710 = vmatprep.subr.bf16.mxu0 0
        %711 = vmatpush2.bf16.msra.mxu0 %v518
        %712 = vmatprep.subr.bf16.mxu0 0
        %713 = vmatpush2.bf16.msra.mxu0 %v517
        %714 = vmatprep.subr.bf16.mxu0 0
        %715 = vmatpush2.bf16.msra.mxu0 %v516
        %716 = vmatprep.subr.bf16.mxu0 0
        %717 = vmatpush2.bf16.msra.mxu0 %v515
        %718 = vmatprep.subr.bf16.mxu0 0
        %719 = vmatpush2.bf16.msra.mxu0 %v514
        %720 = vmatprep.subr.bf16.mxu0 0
        %721 = vmatpush2.bf16.msra.mxu0 %v513
        %722 = vmatprep.subr.bf16.mxu0 0
        %723 = vmatpush2.bf16.msra.mxu0 %v512
        %724 = vmatprep.mubr.bf16.mxu0 %v673
        %725 = vmatmul.mubr.bf16.gmra.mxu0 %v672
        %v726 = vpop.f32.mrf.mxu0
        %v727 = vadd.f32 0.0, %v726
        %v728 = vpop.f32.mrf.mxu0
        %v729 = vpop.f32.mrf.mxu0
        %v730 = vadd.f32 0.0, %v729
        %v731 = vpop.f32.mrf.mxu0
        %732 = vmatprep.mubr.bf16.mxu0 %v675
        %733 = vmatmul.mubr.bf16.gmra.mxu0 %v674
        %v734 = vpop.f32.mrf.mxu0
        %v735 = vadd.f32 0.0, %v734
        %v736 = vpop.f32.mrf.mxu0
        %v737 = vpop.f32.mrf.mxu0
        %v738 = vadd.f32 0.0, %v737
        %v739 = vpop.f32.mrf.mxu0
        %740 = vmatprep.mubr.bf16.mxu0 %v677
        %741 = vmatmul.mubr.bf16.gmra.mxu0 %v676
        %v742 = vpop.f32.mrf.mxu0
        %v743 = vadd.f32 0.0, %v742
        %v744 = vpop.f32.mrf.mxu0
        %v745 = vpop.f32.mrf.mxu0
        %v746 = vadd.f32 0.0, %v745
        %v747 = vpop.f32.mrf.mxu0
        %748 = vmatprep.mubr.bf16.mxu0 %v679
        %749 = vmatmul.mubr.bf16.gmra.mxu0 %v678
        %v750 = vpop.f32.mrf.mxu0
        %v751 = vadd.f32 0.0, %v750
        %v752 = vpop.f32.mrf.mxu0
        %v753 = vpop.f32.mrf.mxu0
        %v754 = vadd.f32 0.0, %v753
        %v755 = vpop.f32.mrf.mxu0
        %756 = vmatprep.mubr.bf16.mxu0 %v681
        %757 = vmatmul.mubr.bf16.gmra.mxu0 %v680
        %v758 = vpop.f32.mrf.mxu0
        %v759 = vadd.f32 0.0, %v758
        %v760 = vpop.f32.mrf.mxu0
        %v761 = vpop.f32.mrf.mxu0
        %v762 = vpop.f32.mrf.mxu0
        %763 = vdwg.mxu0
        %v764 = vld [vmem:[#allocation10] sm:$0xff]
        %v765 = vld [vmem:[#allocation10 + $0x8] sm:$0xff]
        %v766 = vld [vmem:[#allocation10 + $0x10] sm:$0xff]
        %v767 = vld [vmem:[#allocation10 + $0x18] sm:$0xff]
        %v768 = vld [vmem:[#allocation10 + $0x20] sm:$0xff]
        %v769 = vld [vmem:[#allocation10 + $0x28] sm:$0xff]
        %v770 = vld [vmem:[#allocation10 + $0x30] sm:$0xff]
        %v771 = vld [vmem:[#allocation10 + $0x38] sm:$0xff]
        %v772 = vld [vmem:[#allocation10 + $0x40] sm:$0xff]
        %v782 = vunpack.c.l.b16 %v764
        %v783 = vunpack.c.h.b16 %v764
        %v784 = vunpack.c.l.b16 %v765
        %v785 = vunpack.c.h.b16 %v765
        %v786 = vunpack.c.l.b16 %v766
        %v787 = vunpack.c.h.b16 %v766
        %v788 = vunpack.c.l.b16 %v767
        %v789 = vunpack.c.h.b16 %v767
        %v790 = vunpack.c.l.b16 %v768
        %v791 = vunpack.c.h.b16 %v768
        %v792 = vunpack.c.l.b16 %v769
        %v793 = vunpack.c.h.b16 %v769
        %v794 = vunpack.c.l.b16 %v770
        %v795 = vunpack.c.h.b16 %v770
        %v796 = vunpack.c.l.b16 %v771
        %v797 = vunpack.c.h.b16 %v771
        %v798 = vunpack.c.l.b16 %v772
        %v799 = vunpack.c.h.b16 %v772
        %v800 = vpack.c.b16 %v784, %v782
        %v801 = vpack.c.b16 %v785, %v783
        %v802 = vpack.c.b16 %v788, %v786
        %v803 = vpack.c.b16 %v789, %v787
        %v804 = vpack.c.b16 %v792, %v790
        %v805 = vpack.c.b16 %v793, %v791
        %v806 = vpack.c.b16 %v796, %v794
        %v807 = vpack.c.b16 %v797, %v795
        %v808 = vpack.c.b16 %v798, %v798
        %v809 = vpack.c.b16 %v799, %v799
        %820 = vmatprep.subr.bf16.mxu0 0
        %821 = vmatpush1.bf16.msra.mxu0 %v627
        %822 = vmatprep.subr.bf16.mxu0 0
        %823 = vmatpush1.bf16.msra.mxu0 %v626
        %824 = vmatprep.subr.bf16.mxu0 0
        %825 = vmatpush1.bf16.msra.mxu0 %v625
        %826 = vmatprep.subr.bf16.mxu0 0
        %827 = vmatpush1.bf16.msra.mxu0 %v624
        %828 = vmatprep.subr.bf16.mxu0 0
        %829 = vmatpush1.bf16.msra.mxu0 %v623
        %830 = vmatprep.subr.bf16.mxu0 0
        %831 = vmatpush1.bf16.msra.mxu0 %v622
        %832 = vmatprep.subr.bf16.mxu0 0
        %833 = vmatpush1.bf16.msra.mxu0 %v621
        %834 = vmatprep.subr.bf16.mxu0 0
        %835 = vmatpush1.bf16.msra.mxu0 %v620
        %836 = vmatprep.subr.bf16.mxu0 0
        %837 = vmatpush2.bf16.msra.mxu0 %v635
        %838 = vmatprep.subr.bf16.mxu0 0
        %839 = vmatpush2.bf16.msra.mxu0 %v634
        %840 = vmatprep.subr.bf16.mxu0 0
        %841 = vmatpush2.bf16.msra.mxu0 %v633
        %842 = vmatprep.subr.bf16.mxu0 0
        %843 = vmatpush2.bf16.msra.mxu0 %v632
        %844 = vmatprep.subr.bf16.mxu0 0
        %845 = vmatpush2.bf16.msra.mxu0 %v631
        %846 = vmatprep.subr.bf16.mxu0 0
        %847 = vmatpush2.bf16.msra.mxu0 %v630
        %848 = vmatprep.subr.bf16.mxu0 0
        %849 = vmatpush2.bf16.msra.mxu0 %v629
        %850 = vmatprep.subr.bf16.mxu0 0
        %851 = vmatpush2.bf16.msra.mxu0 %v628
        %852 = vmatprep.mubr.bf16.mxu0 %v801
        %853 = vmatmul.mubr.bf16.gmra.mxu0 %v800
        %v854 = vpop.f32.mrf.mxu0
        %v855 = vadd.f32 0.0, %v854
        %v856 = vpop.f32.mrf.mxu0
        %v857 = vpop.f32.mrf.mxu0
        %v858 = vadd.f32 0.0, %v857
        %v859 = vpop.f32.mrf.mxu0
        %860 = vmatprep.mubr.bf16.mxu0 %v803
        %861 = vmatmul.mubr.bf16.gmra.mxu0 %v802
        %v862 = vpop.f32.mrf.mxu0
        %v863 = vadd.f32 0.0, %v862
        %v864 = vpop.f32.mrf.mxu0
        %v865 = vpop.f32.mrf.mxu0
        %v866 = vadd.f32 0.0, %v865
        %v867 = vpop.f32.mrf.mxu0
        %868 = vmatprep.mubr.bf16.mxu0 %v805
        %869 = vmatmul.mubr.bf16.gmra.mxu0 %v804
        %v870 = vpop.f32.mrf.mxu0
        %v871 = vadd.f32 0.0, %v870
        %v872 = vpop.f32.mrf.mxu0
        %v873 = vpop.f32.mrf.mxu0
        %v874 = vadd.f32 0.0, %v873
        %v875 = vpop.f32.mrf.mxu0
        %876 = vmatprep.mubr.bf16.mxu0 %v807
        %877 = vmatmul.mubr.bf16.gmra.mxu0 %v806
        %v878 = vpop.f32.mrf.mxu0
        %v879 = vadd.f32 0.0, %v878
        %v880 = vpop.f32.mrf.mxu0
        %v881 = vpop.f32.mrf.mxu0
        %v882 = vadd.f32 0.0, %v881
        %v883 = vpop.f32.mrf.mxu0
        %884 = vmatprep.mubr.bf16.mxu0 %v809
        %885 = vmatmul.mubr.bf16.gmra.mxu0 %v808
        %v886 = vpop.f32.mrf.mxu0
        %v887 = vadd.f32 0.0, %v886
        %v888 = vpop.f32.mrf.mxu0
        %v889 = vpop.f32.mrf.mxu0
        %v890 = vpop.f32.mrf.mxu0
        %891 = vdwg.mxu0
        %v892 = vmul.f32 %v727, %v855
        %v893 = vmul.f32 %v730, %v858
        %v894 = vmul.f32 %v735, %v863
        %v895 = vmul.f32 %v738, %v866
        %v896 = vmul.f32 %v743, %v871
        %v897 = vmul.f32 %v746, %v874
        %v898 = vmul.f32 %v751, %v879
        %v899 = vmul.f32 %v754, %v882
        %v900 = vmul.f32 %v759, %v887
        %v901 = vadd.f32 %v892, %v893
        %v902 = vadd.f32 %v901, %v894
        %v903 = vadd.f32 %v902, %v895
        %v904 = vadd.f32 %v903, %v896
        %v905 = vadd.f32 %v904, %v897
        %v906 = vadd.f32 %v905, %v898
        %v907 = vadd.f32 %v906, %v899
        %v908 = vadd.f32 %v907, %v900
        %v909 = vrot.slane %v908, 4
        %v910 = vadd.f32 %v908, %v909
        %v911 = vrot.slane %v910, 2
        %v912 = vadd.f32 %v910, %v911
        %v913 = vrot.slane %v912, 1
        %v914 = vadd.f32 %v912, %v913
        %v915 = vld [vmem:[%s368] sm:$0xff]
        %v916 = vld [vmem:[%s4] sm:$0xff]
        %918 = vset.pattern.permute.xlu0 0
        %919 = vperm.xlu0 %918, %v916
        %v920 = vpop.permute.xlu0 %919
        %v922 = vmul.f32 %v915, %v920
        %v923 = vrot.slane %v922, 4
        %v924 = vadd.f32 %v922, %v923
        %v925 = vrot.slane %v924, 2
        %v926 = vadd.f32 %v924, %v925
        %v927 = vrot.slane %v926, 1
        %v928 = vadd.f32 %v926, %v927
        %s929 = sld [smem:[#allocation2]]
        %v930 = vstv %s929
        %v931 = vadd.f32 %v928, %v930
        %v932 = vadd.f32 %v914, %v931
        %s933 = sld [smem:[#allocation3]]
        %v934 = vstv %s933
        %v935 = vmul.f32 %v932, %v934
        %s936 = sld [smem:[#allocation4]]
        %v937 = vstv %s936
        %v938 = vadd.f32 %v935, %v937
        %939 = vst [vmem:[%s364] sm:$0x1] %v938
        %s940 = sand.u32 %s215, 1
        %s941 = scalar_lea.sflag [#allocation7], %s940
        %s942 = sand.u32 %s215, 1
        %s943 = scalar_lea.vmem [#allocation11], %s942
        // Predicated region
        $region65: #{tpu_custom_call.1} parent=51 // pred_check
          %p944 = pneg %p225
        $region66: #{tpu_custom_call.1} parent=51 // pred_check_branch
          %946 = sbr.rel (%p944) target = $region68
        $region67: #{tpu_custom_call.1} parent=51 // pred_region
          %s948 = ssub.s32 16, 16
          %949 = vsyncadd %s941, %s948
          %s950 = smul.addr %s29, 16
          %s951 = scalar_lea.hbm %s8, %s950
          %s953 = sshll.u32 %s943, 4
          %s954 = int_to_ptr.vmem [resolvable:$true] %s953
          %956 = dma.vmem_to_hbm [thread:$0]  %s954, 16, %s951, %s941
        $region68: #{tpu_custom_call.1} parent=51 // pred_fallthru
          _
      $region52: #{tpu_custom_call.1} parent=5 // pred_fallthru
        _
      %p957 = scmp.le.s32.totalorder 2, %s24
      // Predicated region
      $region69: #{tpu_custom_call.1} parent=5 // pred_check
        %p958 = pneg %p957
      $region70: #{tpu_custom_call.1} parent=5 // pred_check_branch
        %960 = sbr.rel (%p958) target = $region72
      $region71: #{tpu_custom_call.1} parent=5 // pred_region
        %s961 = ssub.s32 %s24, 2
        // Predicated region
        $region73: #{tpu_custom_call.1} parent=71 // pred_check
          %p962 = pneg %p231
        $region74: #{tpu_custom_call.1} parent=71 // pred_check_branch
          %964 = sbr.rel (%p962) target = $region76
        $region75: #{tpu_custom_call.1} parent=71 // pred_region
          %s965 = sand.u32 %s216, 1
          %s966 = scalar_lea.sflag [#allocation7], %s965
          %s967 = sand.u32 %s216, 1
          %s968 = scalar_lea.vmem [#allocation11], %s967
          %969 = dma.done %s966, 16
        $region76: #{tpu_custom_call.1} parent=71 // pred_fallthru
          _
      $region72: #{tpu_custom_call.1} parent=5 // pred_fallthru
        _
    $region6: #{tpu_custom_call.1} parent=1 // loop_footer
      %s28 = sadd.s32 1, %s24
    $region7: #{tpu_custom_call.1} parent=1 // loop_footer_branch
      %23 = sbr.rel target = $region3
    $region8: #{tpu_custom_call.1} parent=1 // loop_exit
      _
    %970 = vsyncpa [#allocation6], 1
    %s971 = scalar_lea.sflag [#allocation6], 1
    %972 = vsyncpa %s971, 1
    %973 = vsyncpa [#allocation9], 1
    %974 = vsyncpa [#allocation7], 1
    %s975 = scalar_lea.sflag [#allocation7], 1
    %976 = vsyncpa %s975, 1

// kernel: tpu_custom_call.1
$region0: #{tpu_custom_call.1}
  #allocation0 [shape = 'u32[]', space=smem, size = 0x4, offset = 0x4, fixed_abs, tag = 'smem constant byte address 0x4 - core index']
  #allocation1 [shape = 'u32[144,128]{1,0:T(1,128)}', space=vmem, size = 0x12000, scoped, tag = 'internal scratch']
  #allocation2 [shape = 'f32[1]{0:T(128)S(6)}', space=smem, size = 0x200, scoped, tag = 'scoped memory for tpu_custom_call.1']
  #allocation3 [shape = 'f32[1]{0:T(128)S(6)}', space=smem, size = 0x200, scoped, tag = 'scoped memory for tpu_custom_call.1']
  #allocation4 [shape = 'f32[1]{0:T(128)S(6)}', space=smem, size = 0x200, scoped, tag = 'scoped memory for tpu_custom_call.1']
  %s0 = inlined_call_operand.hbm [shape: s32[2,256], index: 0, kind: input, shape index: {}]
  %s1 = inlined_call_operand.vmem [shape: f32[8,256], index: 1, kind: input, shape index: {}]
  %s2 = inlined_call_operand.hbm [shape: bf16[72,256], index: 2, kind: input, shape index: {}]
  %s3 = inlined_call_operand.hbm [shape: bf16[72,256], index: 3, kind: input, shape index: {}]
  %s4 = inlined_call_operand.vmem [shape: f32[8,1], index: 4, kind: input, shape index: {}]
  %s5 = inlined_call_operand.<no memory space> [shape: f32[1], index: 5, kind: input, shape index: {}]
  %s6 = inlined_call_operand.<no memory space> [shape: f32[1], index: 6, kind: input, shape index: {}]
  %s7 = inlined_call_operand.<no memory space> [shape: f32[1], index: 7, kind: input, shape index: {}]
  %s8 = inlined_call_operand.hbm [shape: f32[1,256], index: 8, kind: output, shape index: {}]
  %s9 = sld [smem:[#allocation0]]
  $region77: #{tpu_custom_call.1} parent=0
    _
  %s11 = ssub.s32 1, %s9
  %s12 = scalar_select 0, %s11, %s9
  %13 = sst [smem:[#allocation2]] %s5
  %14 = sst [smem:[#allocation3]] %s6
  %15 = sst [smem:[#allocation4]] %s7
  $region1: #{tpu_custom_call.1} parent=0
    #allocation5 [shape = 'u8[2048]{0}', space=vmem, size = 0x800, scoped, tag = 'input window, operand 0']
    #allocation6 [shape = 's32[2]{0}', space=sflag, size = 0x8, scoped, tag = 'scoped memory for tpu_custom_call.1']
    #allocation7 [shape = 's32[2]{0}', space=sflag, size = 0x8, scoped, tag = 'scoped memory for tpu_custom_call.1']
    #allocation8 [shape = 'u8[36864]{0}', space=vmem, size = 0x9000, scoped, tag = 'input window, operand 2, single buffered']
    #allocation9 [shape = 's32[1]{0}', space=sflag, size = 0x4, scoped, tag = 'scoped memory for tpu_custom_call.1']
    #allocation10 [shape = 'u8[36864]{0}', space=vmem, size = 0x9000, scoped, tag = 'input window, operand 3, single buffered']
    #allocation11 [shape = 'u8[1024]{0}', space=vmem, size = 0x400, scoped, tag = 'output window, operand 0']
    %16 = vsyncpa [#allocation6], 0
    %s17 = scalar_lea.sflag [#allocation6], 1
    %18 = vsyncpa %s17, 0
    %19 = vsyncpa [#allocation9], 0
    %20 = vsyncpa [#allocation7], 0
    %s21 = scalar_lea.sflag [#allocation7], 1
    %22 = vsyncpa %s21, 0
    loop: start=0, step=1, limit=4
    $region2: #{tpu_custom_call.1} parent=1 // loop_pre_header
      _
    $region3: #{tpu_custom_call.1} parent=1 // loop_header
      %s24 = sphi 0, %s28
      %p25 = scmp.ge.s32.totalorder %s24, 4
      %s34 = sphi 0, %s36
      %s37 = sphi 0, %s34
      %s38 = sphi 0, %s37
      %s54 = sphi 0, %s38
      %s60 = sphi 0, %s62
      %s63 = sphi 0, %s60
      %s64 = sphi 0, %s63
      %s80 = sphi 0, %s64
      %s84 = sphi 0, %s84
      %s86 = sphi 0, %s84
      %s87 = sphi 0, %s86
      %s101 = sphi 0, %s87
      %s105 = sphi 0, %s105
      %s107 = sphi 0, %s105
      %s108 = sphi 0, %s107
      %s122 = sphi 0, %s108
      %s126 = sphi 0, %s126
      %s128 = sphi 0, %s126
      %s129 = sphi 0, %s128
      %s143 = sphi 0, %s129
      %s147 = sphi 0, %s147
      %s149 = sphi 0, %s147
      %s150 = sphi 0, %s149
      %s164 = sphi 0, %s150
      %s168 = sphi 0, %s168
      %s170 = sphi 0, %s168
      %s171 = sphi 0, %s170
      %s185 = sphi 0, %s171
      %s189 = sphi 0, %s189
      %s191 = sphi 0, %s189
      %s192 = sphi 0, %s191
      %s206 = sphi 0, %s192
      %s212 = sphi 0, %s214
      %s215 = sphi 0, %s212
      %s216 = sphi 0, %s215
      %s232 = sphi 0, %s216
    $region4: #{tpu_custom_call.1} parent=1 // loop_header_branch
      %27 = sbr.rel (%p25) target = $region8
    $region5: #{tpu_custom_call.1} parent=1 // loop_body
      %s29 = ssub.s32 %s24, 1
      %s30 = ssub.s32 %s24, 2
      %s31 = sadd.s32 %s24, 1
      %s32 = ssub.s32 %s24, %s31
      %p33 = scmp.eq.s32.totalorder %s32, 0
      %s35 = sadd.s32 %s34, 1
      %s36 = scalar_select %p33, %s34, %s35
      %p39 = pneg %p33
      %p40 = scmp.eq.s32.totalorder %s24, 1
      %p41 = por %p39, %p40
      %p42 = scmp.ne.s32.totalorder %s34, %s37
      %p43 = scmp.eq.s32.totalorder %s24, 0
      %p44 = por %p42, %p43
      %p45 = scmp.ne.s32.totalorder %s34, %s37
      %p46 = scmp.eq.s32.totalorder %s29, 1
      %p47 = por %p45, %p46
      %p48 = scmp.ne.s32.totalorder %s37, %s38
      %p49 = scmp.eq.s32.totalorder %s29, 0
      %p50 = por %p48, %p49
      %p51 = scmp.ne.s32.totalorder %s37, %s38
      %p52 = scmp.eq.s32.totalorder %s30, 1
      %p53 = por %p51, %p52
      %p55 = scmp.ne.s32.totalorder %s38, %s54
      %p56 = scmp.eq.s32.totalorder %s30, 0
      %p57 = por %p55, %p56
      %s58 = ssub.s32 %s24, %s31
      %p59 = scmp.eq.s32.totalorder %s58, 0
      %s61 = sadd.s32 %s60, 1
      %s62 = scalar_select %p59, %s60, %s61
      %p65 = pneg %p59
      %p66 = scmp.eq.s32.totalorder %s24, 1
      %p67 = por %p65, %p66
      %p68 = scmp.ne.s32.totalorder %s60, %s63
      %p69 = scmp.eq.s32.totalorder %s24, 0
      %p70 = por %p68, %p69
      %p71 = scmp.ne.s32.totalorder %s60, %s63
      %p72 = scmp.eq.s32.totalorder %s29, 1
      %p73 = por %p71, %p72
      %p74 = scmp.ne.s32.totalorder %s63, %s64
      %p75 = scmp.eq.s32.totalorder %s29, 0
      %p76 = por %p74, %p75
      %p77 = scmp.ne.s32.totalorder %s63, %s64
      %p78 = scmp.eq.s32.totalorder %s30, 1
      %p79 = por %p77, %p78
      %p81 = scmp.ne.s32.totalorder %s64, %s80
      %p82 = scmp.eq.s32.totalorder %s30, 0
      %p83 = por %p81, %p82
      %s85 = sadd.s32 %s84, 1
      %p88 = scmp.eq.s32.totalorder %s24, 1
      %p89 = scmp.ne.s32.totalorder %s84, %s86
      %p90 = scmp.eq.s32.totalorder %s24, 0
      %p91 = por %p89, %p90
      %p92 = scmp.ne.s32.totalorder %s84, %s86
      %p93 = scmp.eq.s32.totalorder %s29, 1
      %p94 = por %p92, %p93
      %p95 = scmp.ne.s32.totalorder %s86, %s87
      %p96 = scmp.eq.s32.totalorder %s29, 0
      %p97 = por %p95, %p96
      %p98 = scmp.ne.s32.totalorder %s86, %s87
      %p99 = scmp.eq.s32.totalorder %s30, 1
      %p100 = por %p98, %p99
      %p102 = scmp.ne.s32.totalorder %s87, %s101
      %p103 = scmp.eq.s32.totalorder %s30, 0
      %p104 = por %p102, %p103
      %s106 = sadd.s32 %s105, 1
      %p109 = scmp.eq.s32.totalorder %s24, 1
      %p110 = scmp.ne.s32.totalorder %s105, %s107
      %p111 = scmp.eq.s32.totalorder %s24, 0
      %p112 = por %p110, %p111
      %p113 = scmp.ne.s32.totalorder %s105, %s107
      %p114 = scmp.eq.s32.totalorder %s29, 1
      %p115 = por %p113, %p114
      %p116 = scmp.ne.s32.totalorder %s107, %s108
      %p117 = scmp.eq.s32.totalorder %s29, 0
      %p118 = por %p116, %p117
      %p119 = scmp.ne.s32.totalorder %s107, %s108
      %p120 = scmp.eq.s32.totalorder %s30, 1
      %p121 = por %p119, %p120
      %p123 = scmp.ne.s32.totalorder %s108, %s122
      %p124 = scmp.eq.s32.totalorder %s30, 0
      %p125 = por %p123, %p124
      %s127 = sadd.s32 %s126, 1
      %p130 = scmp.eq.s32.totalorder %s24, 1
      %p131 = scmp.ne.s32.totalorder %s126, %s128
      %p132 = scmp.eq.s32.totalorder %s24, 0
      %p133 = por %p131, %p132
      %p134 = scmp.ne.s32.totalorder %s126, %s128
      %p135 = scmp.eq.s32.totalorder %s29, 1
      %p136 = por %p134, %p135
      %p137 = scmp.ne.s32.totalorder %s128, %s129
      %p138 = scmp.eq.s32.totalorder %s29, 0
      %p139 = por %p137, %p138
      %p140 = scmp.ne.s32.totalorder %s128, %s129
      %p141 = scmp.eq.s32.totalorder %s30, 1
      %p142 = por %p140, %p141
      %p144 = scmp.ne.s32.totalorder %s129, %s143
      %p145 = scmp.eq.s32.totalorder %s30, 0
      %p146 = por %p144, %p145
      %s148 = sadd.s32 %s147, 1
      %p151 = scmp.eq.s32.totalorder %s24, 1
      %p152 = scmp.ne.s32.totalorder %s147, %s149
      %p153 = scmp.eq.s32.totalorder %s24, 0
      %p154 = por %p152, %p153
      %p155 = scmp.ne.s32.totalorder %s147, %s149
      %p156 = scmp.eq.s32.totalorder %s29, 1
      %p157 = por %p155, %p156
      %p158 = scmp.ne.s32.totalorder %s149, %s150
      %p159 = scmp.eq.s32.totalorder %s29, 0
      %p160 = por %p158, %p159
      %p161 = scmp.ne.s32.totalorder %s149, %s150
      %p162 = scmp.eq.s32.totalorder %s30, 1
      %p163 = por %p161, %p162
      %p165 = scmp.ne.s32.totalorder %s150, %s164
      %p166 = scmp.eq.s32.totalorder %s30, 0
      %p167 = por %p165, %p166
      %s169 = sadd.s32 %s168, 1
      %p172 = scmp.eq.s32.totalorder %s24, 1
      %p173 = scmp.ne.s32.totalorder %s168, %s170
      %p174 = scmp.eq.s32.totalorder %s24, 0
      %p175 = por %p173, %p174
      %p176 = scmp.ne.s32.totalorder %s168, %s170
      %p177 = scmp.eq.s32.totalorder %s29, 1
      %p178 = por %p176, %p177
      %p179 = scmp.ne.s32.totalorder %s170, %s171
      %p180 = scmp.eq.s32.totalorder %s29, 0
      %p181 = por %p179, %p180
      %p182 = scmp.ne.s32.totalorder %s170, %s171
      %p183 = scmp.eq.s32.totalorder %s30, 1
      %p184 = por %p182, %p183
      %p186 = scmp.ne.s32.totalorder %s171, %s185
      %p187 = scmp.eq.s32.totalorder %s30, 0
      %p188 = por %p186, %p187
      %s190 = sadd.s32 %s189, 1
      %p193 = scmp.eq.s32.totalorder %s24, 1
      %p194 = scmp.ne.s32.totalorder %s189, %s191
      %p195 = scmp.eq.s32.totalorder %s24, 0
      %p196 = por %p194, %p195
      %p197 = scmp.ne.s32.totalorder %s189, %s191
      %p198 = scmp.eq.s32.totalorder %s29, 1
      %p199 = por %p197, %p198
      %p200 = scmp.ne.s32.totalorder %s191, %s192
      %p201 = scmp.eq.s32.totalorder %s29, 0
      %p202 = por %p200, %p201
      %p203 = scmp.ne.s32.totalorder %s191, %s192
      %p204 = scmp.eq.s32.totalorder %s30, 1
      %p205 = por %p203, %p204
      %p207 = scmp.ne.s32.totalorder %s192, %s206
      %p208 = scmp.eq.s32.totalorder %s30, 0
      %p209 = por %p207, %p208
      %s210 = ssub.s32 %s24, %s31
      %p211 = scmp.eq.s32.totalorder %s210, 0
      %s213 = sadd.s32 %s212, 1
      %s214 = scalar_select %p211, %s212, %s213
      %p217 = pneg %p211
      %p218 = scmp.eq.s32.totalorder %s24, 1
      %p219 = por %p217, %p218
      %p220 = scmp.ne.s32.totalorder %s212, %s215
      %p221 = scmp.eq.s32.totalorder %s24, 0
      %p222 = por %p220, %p221
      %p223 = scmp.ne.s32.totalorder %s212, %s215
      %p224 = scmp.eq.s32.totalorder %s29, 1
      %p225 = por %p223, %p224
      %p226 = scmp.ne.s32.totalorder %s215, %s216
      %p227 = scmp.eq.s32.totalorder %s29, 0
      %p228 = por %p226, %p227
      %p229 = scmp.ne.s32.totalorder %s215, %s216
      %p230 = scmp.eq.s32.totalorder %s30, 1
      %p231 = por %p229, %p230
      %p233 = scmp.ne.s32.totalorder %s216, %s232
      %p234 = scmp.eq.s32.totalorder %s30, 0
      %p235 = por %p233, %p234
      %p236 = scmp.le.s32.totalorder 1, %s24
      %p237 = scmp.lt.s32.totalorder %s24, 3
      %p238 = pnand %p236, %p237
      %p239 = pneg %p238
      // Predicated region
      $region9: #{tpu_custom_call.1} parent=5 // pred_check
        _
      $region10: #{tpu_custom_call.1} parent=5 // pred_check_branch
        %241 = sbr.rel (%p238) target = $region12
      $region11: #{tpu_custom_call.1} parent=5 // pred_region
        %s242 = ssub.s32 %s24, 1
        // Predicated region
        $region13: #{tpu_custom_call.1} parent=11 // pred_check
          %p243 = pneg %p97
        $region14: #{tpu_custom_call.1} parent=11 // pred_check_branch
          %245 = sbr.rel (%p243) target = $region16
        $region15: #{tpu_custom_call.1} parent=11 // pred_region
          %s247 = ssub.s32 1152, 1152
          %248 = vsyncadd [#allocation9], %s247
          %s249 = sshll.u32 [#allocation8], 4
          %s250 = int_to_ptr.vmem [resolvable:$true] %s249
          %255 = dma.hbm_to_vmem [thread:$0]  %s2, 1152, %s250, [#allocation9], 128, 128, 8
        $region16: #{tpu_custom_call.1} parent=11 // pred_fallthru
          _
        // Predicated region
        $region17: #{tpu_custom_call.1} parent=11 // pred_check
          %p256 = pneg %p118
        $region18: #{tpu_custom_call.1} parent=11 // pred_check_branch
          %258 = sbr.rel (%p256) target = $region20
        $region19: #{tpu_custom_call.1} parent=11 // pred_region
          %s260 = ssub.s32 1152, 1152
          %261 = vsyncadd [#allocation9], %s260
          %s262 = sshll.u32 [#allocation10], 4
          %s263 = int_to_ptr.vmem [resolvable:$true] %s262
          %268 = dma.hbm_to_vmem [thread:$0]  %s3, 1152, %s263, [#allocation9], 128, 128, 8
        $region20: #{tpu_custom_call.1} parent=11 // pred_fallthru
          _
        // Predicated region
        $region21: #{tpu_custom_call.1} parent=11 // pred_check
          %p269 = pneg %p139
        $region22: #{tpu_custom_call.1} parent=11 // pred_check_branch
          %271 = sbr.rel (%p269) target = $region24
        $region23: #{tpu_custom_call.1} parent=11 // pred_region
          _
        $region24: #{tpu_custom_call.1} parent=11 // pred_fallthru
          _
        // Predicated region
        $region25: #{tpu_custom_call.1} parent=11 // pred_check
          %p272 = pneg %p160
        $region26: #{tpu_custom_call.1} parent=11 // pred_check_branch
          %274 = sbr.rel (%p272) target = $region28
        $region27: #{tpu_custom_call.1} parent=11 // pred_region
          _
        $region28: #{tpu_custom_call.1} parent=11 // pred_fallthru
          _
        // Predicated region
        $region29: #{tpu_custom_call.1} parent=11 // pred_check
          %p275 = pneg %p181
        $region30: #{tpu_custom_call.1} parent=11 // pred_check_branch
          %277 = sbr.rel (%p275) target = $region32
        $region31: #{tpu_custom_call.1} parent=11 // pred_region
          _
        $region32: #{tpu_custom_call.1} parent=11 // pred_fallthru
          _
        // Predicated region
        $region33: #{tpu_custom_call.1} parent=11 // pred_check
          %p278 = pneg %p202
        $region34: #{tpu_custom_call.1} parent=11 // pred_check_branch
          %280 = sbr.rel (%p278) target = $region36
        $region35: #{tpu_custom_call.1} parent=11 // pred_region
          _
        $region36: #{tpu_custom_call.1} parent=11 // pred_fallthru
          _
      $region12: #{tpu_custom_call.1} parent=5 // pred_fallthru
        _
      %p281 = scmp.lt.s32.totalorder %s24, 2
      // Predicated region
      $region37: #{tpu_custom_call.1} parent=5 // pred_check
        %p282 = pneg %p281
      $region38: #{tpu_custom_call.1} parent=5 // pred_check_branch
        %284 = sbr.rel (%p282) target = $region40
      $region39: #{tpu_custom_call.1} parent=5 // pred_region
        // Predicated region
        $region41: #{tpu_custom_call.1} parent=39 // pred_check
          %p285 = pneg %p44
        $region42: #{tpu_custom_call.1} parent=39 // pred_check_branch
          %287 = sbr.rel (%p285) target = $region44
        $region43: #{tpu_custom_call.1} parent=39 // pred_region
          %s288 = sand.u32 %s34, 1
          %s289 = scalar_lea.sflag [#allocation6], %s288
          %s290 = sand.u32 %s34, 1
          %s291 = smul.addr %s290, 2
          %s292 = scalar_lea.vmem [#allocation5], %s291
          %s294 = ssub.s32 32, 32
          %295 = vsyncadd %s289, %s294
          %s296 = smul.addr %s24, 32
          %s297 = scalar_lea.hbm %s0, %s296
          %s299 = sshll.u32 %s292, 4
          %s300 = int_to_ptr.vmem [resolvable:$true] %s299
          %302 = dma.hbm_to_vmem [thread:$0]  %s297, 32, %s300, %s289
        $region44: #{tpu_custom_call.1} parent=39 // pred_fallthru
          _
        // Predicated region
        $region45: #{tpu_custom_call.1} parent=39 // pred_check
          %p303 = pneg %p70
        $region46: #{tpu_custom_call.1} parent=39 // pred_check_branch
          %305 = sbr.rel (%p303) target = $region48
        $region47: #{tpu_custom_call.1} parent=39 // pred_region
          %p306 = scmp.lt.s32.totalorder %s24, 1
          %s307 = scalar_select %p306, %s24, 1
          %s308 = smul.addr %s307, 8
          %s309 = scalar_lea.vmem %s1, %s308
        $region48: #{tpu_custom_call.1} parent=39 // pred_fallthru
          _
      $region40: #{tpu_custom_call.1} parent=5 // pred_fallthru
        _
      %p310 = scmp.le.s32.totalorder 1, %s24
      %p311 = scmp.lt.s32.totalorder %s24, 3
      %p312 = pnand %p310, %p311
      %p313 = pneg %p312
      // Predicated region
      $region49: #{tpu_custom_call.1} parent=5 // pred_check
        _
      $region50: #{tpu_custom_call.1} parent=5 // pred_check_branch
        %315 = sbr.rel (%p312) target = $region52
      $region51: #{tpu_custom_call.1} parent=5 // pred_region
        %s316 = ssub.s32 %s24, 1
        %s317 = sand.u32 %s37, 1
        %s318 = scalar_lea.sflag [#allocation6], %s317
        %s319 = sand.u32 %s37, 1
        %s320 = smul.addr %s319, 2
        %s321 = scalar_lea.vmem [#allocation5], %s320
        // Predicated region
        $region53: #{tpu_custom_call.1} parent=51 // pred_check
          %p322 = pneg %p50
        $region54: #{tpu_custom_call.1} parent=51 // pred_check_branch
          %324 = sbr.rel (%p322) target = $region56
        $region55: #{tpu_custom_call.1} parent=51 // pred_region
          %325 = dma.done %s318, 32
        $region56: #{tpu_custom_call.1} parent=51 // pred_fallthru
          _
        // Predicated region
        $region57: #{tpu_custom_call.1} parent=51 // pred_check
          %p326 = pneg %p97
        $region58: #{tpu_custom_call.1} parent=51 // pred_check_branch
          %328 = sbr.rel (%p326) target = $region60
        $region59: #{tpu_custom_call.1} parent=51 // pred_region
          %329 = dma.done [#allocation9], 1152
        $region60: #{tpu_custom_call.1} parent=51 // pred_fallthru
          _
        // Predicated region
        $region61: #{tpu_custom_call.1} parent=51 // pred_check
          %p330 = pneg %p118
        $region62: #{tpu_custom_call.1} parent=51 // pred_check_branch
          %332 = sbr.rel (%p330) target = $region64
        $region63: #{tpu_custom_call.1} parent=51 // pred_region
          %333 = dma.done [#allocation9], 1152
        $region64: #{tpu_custom_call.1} parent=51 // pred_fallthru
          _
        %s334 = sand.u32 %s37, 1
        %s335 = scalar_lea.sflag [#allocation6], %s334
        %s336 = sand.u32 %s37, 1
        %s337 = smul.addr %s336, 2
        %s338 = scalar_lea.vmem [#allocation5], %s337
        %p339 = pneg %p50
        %p340 = pneg %p47
        %p341 = scmp.lt.s32.totalorder %s29, 1
        %s342 = scalar_select %p341, %s29, 1
        %s343 = smul.addr %s342, 8
        %s344 = scalar_lea.vmem %s1, %s343
        %p345 = pneg %p76
        %p346 = pneg %p73
        %p347 = pneg %p97
        %p348 = pneg %p94
        %p349 = pneg %p118
        %p350 = pneg %p115
        %p351 = pneg %p139
        %p352 = pneg %p136
        %p353 = pneg %p160
        %p354 = pneg %p157
        %p355 = pneg %p181
        %p356 = pneg %p178
        %p357 = pneg %p202
        %p358 = pneg %p199
        %p359 = pneg %p228
        %p360 = pneg %p225
        %s361 = sand.u32 %s215, 1
        %s362 = scalar_lea.sflag [#allocation7], %s361
        %s363 = sand.u32 %s215, 1
        %s364 = scalar_lea.vmem [#allocation11], %s363
        %p365 = scmp.lt.s32.totalorder %s29, 1
        %s366 = scalar_select %p365, %s29, 1
        %s367 = smul.addr %s366, 8
        %s368 = scalar_lea.vmem %s1, %s367
        %v370 = vld [vmem:[%s321] sm:$0x3]
        %v371 = vlaneseq
        %v372 = vshrl.u32 %v371, 7
        %v373 = vadd.s32 %v372, 8
        %v374 = vadd.s32 %v372, 16
        %v375 = vadd.s32 %v372, 24
        %v376 = vadd.s32 %v372, 32
        %v377 = vadd.s32 %v372, 40
        %v378 = vadd.s32 %v372, 48
        %v379 = vadd.s32 %v372, 56
        %v380 = vadd.s32 %v372, 64
        %v381 = vadd.s32 %v372, 72
        %v382 = vadd.s32 %v372, 80
        %v383 = vadd.s32 %v372, 88
        %v384 = vadd.s32 %v372, 96
        %v385 = vadd.s32 %v372, 104
        %v386 = vadd.s32 %v372, 112
        %v387 = vadd.s32 %v372, 120
        %v388 = vadd.s32 %v372, 128
        %v389 = vadd.s32 %v372, 136
        %v390 = vadd.s32 %v372, 144
        %v391 = vadd.s32 %v372, 152
        %v392 = vadd.s32 %v372, 160
        %v393 = vadd.s32 %v372, 168
        %v394 = vadd.s32 %v372, 176
        %v395 = vadd.s32 %v372, 184
        %v396 = vadd.s32 %v372, 192
        %v397 = vadd.s32 %v372, 200
        %v398 = vadd.s32 %v372, 208
        %v399 = vadd.s32 %v372, 216
        %v400 = vadd.s32 %v372, 224
        %v401 = vadd.s32 %v372, 232
        %v402 = vadd.s32 %v372, 240
        %v403 = vadd.s32 %v372, 248
        %v404 = vlaneseq
        %v405 = vshrl.u32 %v404, 7
        %v406 = vsub.s32 0, %v405
        %v407 = vrot.slane %v370, %v406
        %vm408 = vcmp.eq.s32.totalorder %v372, %v407
        %vm409 = vcmp.eq.s32.totalorder %v373, %v407
        %vm410 = vcmp.eq.s32.totalorder %v374, %v407
        %vm411 = vcmp.eq.s32.totalorder %v375, %v407
        %vm412 = vcmp.eq.s32.totalorder %v376, %v407
        %vm413 = vcmp.eq.s32.totalorder %v377, %v407
        %vm414 = vcmp.eq.s32.totalorder %v378, %v407
        %vm415 = vcmp.eq.s32.totalorder %v379, %v407
        %vm416 = vcmp.eq.s32.totalorder %v380, %v407
        %vm417 = vcmp.eq.s32.totalorder %v381, %v407
        %vm418 = vcmp.eq.s32.totalorder %v382, %v407
        %vm419 = vcmp.eq.s32.totalorder %v383, %v407
        %vm420 = vcmp.eq.s32.totalorder %v384, %v407
        %vm421 = vcmp.eq.s32.totalorder %v385, %v407
        %vm422 = vcmp.eq.s32.totalorder %v386, %v407
        %vm423 = vcmp.eq.s32.totalorder %v387, %v407
        %vm424 = vcmp.eq.s32.totalorder %v388, %v407
        %vm425 = vcmp.eq.s32.totalorder %v389, %v407
        %vm426 = vcmp.eq.s32.totalorder %v390, %v407
        %vm427 = vcmp.eq.s32.totalorder %v391, %v407
        %vm428 = vcmp.eq.s32.totalorder %v392, %v407
        %vm429 = vcmp.eq.s32.totalorder %v393, %v407
        %vm430 = vcmp.eq.s32.totalorder %v394, %v407
        %vm431 = vcmp.eq.s32.totalorder %v395, %v407
        %vm432 = vcmp.eq.s32.totalorder %v396, %v407
        %vm433 = vcmp.eq.s32.totalorder %v397, %v407
        %vm434 = vcmp.eq.s32.totalorder %v398, %v407
        %vm435 = vcmp.eq.s32.totalorder %v399, %v407
        %vm436 = vcmp.eq.s32.totalorder %v400, %v407
        %vm437 = vcmp.eq.s32.totalorder %v401, %v407
        %vm438 = vcmp.eq.s32.totalorder %v402, %v407
        %vm439 = vcmp.eq.s32.totalorder %v403, %v407
        %v440 = vsel %vm408, 1, 0
        %v441 = vsel %vm409, 1, 0
        %v442 = vsel %vm410, 1, 0
        %v443 = vsel %vm411, 1, 0
        %v444 = vsel %vm412, 1, 0
        %v445 = vsel %vm413, 1, 0
        %v446 = vsel %vm414, 1, 0
        %v447 = vsel %vm415, 1, 0
        %v448 = vsel %vm416, 1, 0
        %v449 = vsel %vm417, 1, 0
        %v450 = vsel %vm418, 1, 0
        %v451 = vsel %vm419, 1, 0
        %v452 = vsel %vm420, 1, 0
        %v453 = vsel %vm421, 1, 0
        %v454 = vsel %vm422, 1, 0
        %v455 = vsel %vm423, 1, 0
        %v456 = vsel %vm424, 1, 0
        %v457 = vsel %vm425, 1, 0
        %v458 = vsel %vm426, 1, 0
        %v459 = vsel %vm427, 1, 0
        %v460 = vsel %vm428, 1, 0
        %v461 = vsel %vm429, 1, 0
        %v462 = vsel %vm430, 1, 0
        %v463 = vsel %vm431, 1, 0
        %v464 = vsel %vm432, 1, 0
        %v465 = vsel %vm433, 1, 0
        %v466 = vsel %vm434, 1, 0
        %v467 = vsel %vm435, 1, 0
        %v468 = vsel %vm436, 1, 0
        %v469 = vsel %vm437, 1, 0
        %v470 = vsel %vm438, 1, 0
        %v471 = vsel %vm439, 1, 0
        %v472 = vcvt.s32.f32 %v440
        %v473 = vcvt.s32.f32 %v441
        %v474 = vcvt.s32.f32 %v442
        %v475 = vcvt.s32.f32 %v443
        %v476 = vcvt.s32.f32 %v444
        %v477 = vcvt.s32.f32 %v445
        %v478 = vcvt.s32.f32 %v446
        %v479 = vcvt.s32.f32 %v447
        %v480 = vcvt.s32.f32 %v448
        %v481 = vcvt.s32.f32 %v449
        %v482 = vcvt.s32.f32 %v450
        %v483 = vcvt.s32.f32 %v451
        %v484 = vcvt.s32.f32 %v452
        %v485 = vcvt.s32.f32 %v453
        %v486 = vcvt.s32.f32 %v454
        %v487 = vcvt.s32.f32 %v455
        %v488 = vcvt.s32.f32 %v456
        %v489 = vcvt.s32.f32 %v457
        %v490 = vcvt.s32.f32 %v458
        %v491 = vcvt.s32.f32 %v459
        %v492 = vcvt.s32.f32 %v460
        %v493 = vcvt.s32.f32 %v461
        %v494 = vcvt.s32.f32 %v462
        %v495 = vcvt.s32.f32 %v463
        %v496 = vcvt.s32.f32 %v464
        %v497 = vcvt.s32.f32 %v465
        %v498 = vcvt.s32.f32 %v466
        %v499 = vcvt.s32.f32 %v467
        %v500 = vcvt.s32.f32 %v468
        %v501 = vcvt.s32.f32 %v469
        %v502 = vcvt.s32.f32 %v470
        %v503 = vcvt.s32.f32 %v471
        %v504 = vpack.c.bf16 %v473, %v472
        %v505 = vpack.c.bf16 %v475, %v474
        %v506 = vpack.c.bf16 %v477, %v476
        %v507 = vpack.c.bf16 %v479, %v478
        %v508 = vpack.c.bf16 %v481, %v480
        %v509 = vpack.c.bf16 %v483, %v482
        %v510 = vpack.c.bf16 %v485, %v484
        %v511 = vpack.c.bf16 %v487, %v486
        %v512 = vpack.c.bf16 %v489, %v488
        %v513 = vpack.c.bf16 %v491, %v490
        %v514 = vpack.c.bf16 %v493, %v492
        %v515 = vpack.c.bf16 %v495, %v494
        %v516 = vpack.c.bf16 %v497, %v496
        %v517 = vpack.c.bf16 %v499, %v498
        %v518 = vpack.c.bf16 %v501, %v500
        %v519 = vpack.c.bf16 %v503, %v502
        %v520 = vlaneseq
        %v521 = vshrl.u32 %v520, 7
        %v522 = vsub.s32 1, %v521
        %v523 = vrot.slane %v370, %v522
        %vm524 = vcmp.eq.s32.totalorder %v372, %v523
        %vm525 = vcmp.eq.s32.totalorder %v373, %v523
        %vm526 = vcmp.eq.s32.totalorder %v374, %v523
        %vm527 = vcmp.eq.s32.totalorder %v375, %v523
        %vm528 = vcmp.eq.s32.totalorder %v376, %v523
        %vm529 = vcmp.eq.s32.totalorder %v377, %v523
        %vm530 = vcmp.eq.s32.totalorder %v378, %v523
        %vm531 = vcmp.eq.s32.totalorder %v379, %v523
        %vm532 = vcmp.eq.s32.totalorder %v380, %v523
        %vm533 = vcmp.eq.s32.totalorder %v381, %v523
        %vm534 = vcmp.eq.s32.totalorder %v382, %v523
        %vm535 = vcmp.eq.s32.totalorder %v383, %v523
        %vm536 = vcmp.eq.s32.totalorder %v384, %v523
        %vm537 = vcmp.eq.s32.totalorder %v385, %v523
        %vm538 = vcmp.eq.s32.totalorder %v386, %v523
        %vm539 = vcmp.eq.s32.totalorder %v387, %v523
        %vm540 = vcmp.eq.s32.totalorder %v388, %v523
        %vm541 = vcmp.eq.s32.totalorder %v389, %v523
        %vm542 = vcmp.eq.s32.totalorder %v390, %v523
        %vm543 = vcmp.eq.s32.totalorder %v391, %v523
        %vm544 = vcmp.eq.s32.totalorder %v392, %v523
        %vm545 = vcmp.eq.s32.totalorder %v393, %v523
        %vm546 = vcmp.eq.s32.totalorder %v394, %v523
        %vm547 = vcmp.eq.s32.totalorder %v395, %v523
        %vm548 = vcmp.eq.s32.totalorder %v396, %v523
        %vm549 = vcmp.eq.s32.totalorder %v397, %v523
        %vm550 = vcmp.eq.s32.totalorder %v398, %v523
        %vm551 = vcmp.eq.s32.totalorder %v399, %v523
        %vm552 = vcmp.eq.s32.totalorder %v400, %v523
        %vm553 = vcmp.eq.s32.totalorder %v401, %v523
        %vm554 = vcmp.eq.s32.totalorder %v402, %v523
        %vm555 = vcmp.eq.s32.totalorder %v403, %v523
        %v556 = vsel %vm524, 1, 0
        %v557 = vsel %vm525, 1, 0
        %v558 = vsel %vm526, 1, 0
        %v559 = vsel %vm527, 1, 0
        %v560 = vsel %vm528, 1, 0
        %v561 = vsel %vm529, 1, 0
        %v562 = vsel %vm530, 1, 0
        %v563 = vsel %vm531, 1, 0
        %v564 = vsel %vm532, 1, 0
        %v565 = vsel %vm533, 1, 0
        %v566 = vsel %vm534, 1, 0
        %v567 = vsel %vm535, 1, 0
        %v568 = vsel %vm536, 1, 0
        %v569 = vsel %vm537, 1, 0
        %v570 = vsel %vm538, 1, 0
        %v571 = vsel %vm539, 1, 0
        %v572 = vsel %vm540, 1, 0
        %v573 = vsel %vm541, 1, 0
        %v574 = vsel %vm542, 1, 0
        %v575 = vsel %vm543, 1, 0
        %v576 = vsel %vm544, 1, 0
        %v577 = vsel %vm545, 1, 0
        %v578 = vsel %vm546, 1, 0
        %v579 = vsel %vm547, 1, 0
        %v580 = vsel %vm548, 1, 0
        %v581 = vsel %vm549, 1, 0
        %v582 = vsel %vm550, 1, 0
        %v583 = vsel %vm551, 1, 0
        %v584 = vsel %vm552, 1, 0
        %v585 = vsel %vm553, 1, 0
        %v586 = vsel %vm554, 1, 0
        %v587 = vsel %vm555, 1, 0
        %v588 = vcvt.s32.f32 %v556
        %v589 = vcvt.s32.f32 %v557
        %v590 = vcvt.s32.f32 %v558
        %v591 = vcvt.s32.f32 %v559
        %v592 = vcvt.s32.f32 %v560
        %v593 = vcvt.s32.f32 %v561
        %v594 = vcvt.s32.f32 %v562
        %v595 = vcvt.s32.f32 %v563
        %v596 = vcvt.s32.f32 %v564
        %v597 = vcvt.s32.f32 %v565
        %v598 = vcvt.s32.f32 %v566
        %v599 = vcvt.s32.f32 %v567
        %v600 = vcvt.s32.f32 %v568
        %v601 = vcvt.s32.f32 %v569
        %v602 = vcvt.s32.f32 %v570
        %v603 = vcvt.s32.f32 %v571
        %v604 = vcvt.s32.f32 %v572
        %v605 = vcvt.s32.f32 %v573
        %v606 = vcvt.s32.f32 %v574
        %v607 = vcvt.s32.f32 %v575
        %v608 = vcvt.s32.f32 %v576
        %v609 = vcvt.s32.f32 %v577
        %v610 = vcvt.s32.f32 %v578
        %v611 = vcvt.s32.f32 %v579
        %v612 = vcvt.s32.f32 %v580
        %v613 = vcvt.s32.f32 %v581
        %v614 = vcvt.s32.f32 %v582
        %v615 = vcvt.s32.f32 %v583
        %v616 = vcvt.s32.f32 %v584
        %v617 = vcvt.s32.f32 %v585
        %v618 = vcvt.s32.f32 %v586
        %v619 = vcvt.s32.f32 %v587
        %v620 = vpack.c.bf16 %v589, %v588
        %v621 = vpack.c.bf16 %v591, %v590
        %v622 = vpack.c.bf16 %v593, %v592
        %v623 = vpack.c.bf16 %v595, %v594
        %v624 = vpack.c.bf16 %v597, %v596
        %v625 = vpack.c.bf16 %v599, %v598
        %v626 = vpack.c.bf16 %v601, %v600
        %v627 = vpack.c.bf16 %v603, %v602
        %v628 = vpack.c.bf16 %v605, %v604
        %v629 = vpack.c.bf16 %v607, %v606
        %v630 = vpack.c.bf16 %v609, %v608
        %v631 = vpack.c.bf16 %v611, %v610
        %v632 = vpack.c.bf16 %v613, %v612
        %v633 = vpack.c.bf16 %v615, %v614
        %v634 = vpack.c.bf16 %v617, %v616
        %v635 = vpack.c.bf16 %v619, %v618
        %v636 = vld [vmem:[#allocation8] sm:$0xff]
        %v637 = vld [vmem:[#allocation8 + $0x8] sm:$0xff]
        %v638 = vld [vmem:[#allocation8 + $0x10] sm:$0xff]
        %v639 = vld [vmem:[#allocation8 + $0x18] sm:$0xff]
        %v640 = vld [vmem:[#allocation8 + $0x20] sm:$0xff]
        %v641 = vld [vmem:[#allocation8 + $0x28] sm:$0xff]
        %v642 = vld [vmem:[#allocation8 + $0x30] sm:$0xff]
        %v643 = vld [vmem:[#allocation8 + $0x38] sm:$0xff]
        %v644 = vld [vmem:[#allocation8 + $0x40] sm:$0xff]
        %v654 = vunpack.c.l.b16 %v636
        %v655 = vunpack.c.h.b16 %v636
        %v656 = vunpack.c.l.b16 %v637
        %v657 = vunpack.c.h.b16 %v637
        %v658 = vunpack.c.l.b16 %v638
        %v659 = vunpack.c.h.b16 %v638
        %v660 = vunpack.c.l.b16 %v639
        %v661 = vunpack.c.h.b16 %v639
        %v662 = vunpack.c.l.b16 %v640
        %v663 = vunpack.c.h.b16 %v640
        %v664 = vunpack.c.l.b16 %v641
        %v665 = vunpack.c.h.b16 %v641
        %v666 = vunpack.c.l.b16 %v642
        %v667 = vunpack.c.h.b16 %v642
        %v668 = vunpack.c.l.b16 %v643
        %v669 = vunpack.c.h.b16 %v643
        %v670 = vunpack.c.l.b16 %v644
        %v671 = vunpack.c.h.b16 %v644
        %v672 = vpack.c.b16 %v656, %v654
        %v673 = vpack.c.b16 %v657, %v655
        %v674 = vpack.c.b16 %v660, %v658
        %v675 = vpack.c.b16 %v661, %v659
        %v676 = vpack.c.b16 %v664, %v662
        %v677 = vpack.c.b16 %v665, %v663
        %v678 = vpack.c.b16 %v668, %v666
        %v679 = vpack.c.b16 %v669, %v667
        %v680 = vpack.c.b16 %v670, %v670
        %v681 = vpack.c.b16 %v671, %v671
        %692 = vmatprep.subr.bf16.mxu0 0
        %693 = vmatpush1.bf16.msra.mxu0 %v511
        %694 = vmatprep.subr.bf16.mxu0 0
        %695 = vmatpush1.bf16.msra.mxu0 %v510
        %696 = vmatprep.subr.bf16.mxu0 0
        %697 = vmatpush1.bf16.msra.mxu0 %v509
        %698 = vmatprep.subr.bf16.mxu0 0
        %699 = vmatpush1.bf16.msra.mxu0 %v508
        %700 = vmatprep.subr.bf16.mxu0 0
        %701 = vmatpush1.bf16.msra.mxu0 %v507
        %702 = vmatprep.subr.bf16.mxu0 0
        %703 = vmatpush1.bf16.msra.mxu0 %v506
        %704 = vmatprep.subr.bf16.mxu0 0
        %705 = vmatpush1.bf16.msra.mxu0 %v505
        %706 = vmatprep.subr.bf16.mxu0 0
        %707 = vmatpush1.bf16.msra.mxu0 %v504
        %708 = vmatprep.subr.bf16.mxu0 0
        %709 = vmatpush2.bf16.msra.mxu0 %v519
        %710 = vmatprep.subr.bf16.mxu0 0
        %711 = vmatpush2.bf16.msra.mxu0 %v518
        %712 = vmatprep.subr.bf16.mxu0 0
        %713 = vmatpush2.bf16.msra.mxu0 %v517
        %714 = vmatprep.subr.bf16.mxu0 0
        %715 = vmatpush2.bf16.msra.mxu0 %v516
        %716 = vmatprep.subr.bf16.mxu0 0
        %717 = vmatpush2.bf16.msra.mxu0 %v515
        %718 = vmatprep.subr.bf16.mxu0 0
        %719 = vmatpush2.bf16.msra.mxu0 %v514
        %720 = vmatprep.subr.bf16.mxu0 0
        %721 = vmatpush2.bf16.msra.mxu0 %v513
        %722 = vmatprep.subr.bf16.mxu0 0
        %723 = vmatpush2.bf16.msra.mxu0 %v512
        %724 = vmatprep.mubr.bf16.mxu0 %v673
        %725 = vmatmul.mubr.bf16.gmra.mxu0 %v672
        %v726 = vpop.f32.mrf.mxu0
        %v727 = vadd.f32 0.0, %v726
        %v728 = vpop.f32.mrf.mxu0
        %v729 = vpop.f32.mrf.mxu0
        %v730 = vadd.f32 0.0, %v729
        %v731 = vpop.f32.mrf.mxu0
        %732 = vmatprep.mubr.bf16.mxu0 %v675
        %733 = vmatmul.mubr.bf16.gmra.mxu0 %v674
        %v734 = vpop.f32.mrf.mxu0
        %v735 = vadd.f32 0.0, %v734
        %v736 = vpop.f32.mrf.mxu0
        %v737 = vpop.f32.mrf.mxu0
        %v738 = vadd.f32 0.0, %v737
        %v739 = vpop.f32.mrf.mxu0
        %740 = vmatprep.mubr.bf16.mxu0 %v677
        %741 = vmatmul.mubr.bf16.gmra.mxu0 %v676
        %v742 = vpop.f32.mrf.mxu0
        %v743 = vadd.f32 0.0, %v742
        %v744 = vpop.f32.mrf.mxu0
        %v745 = vpop.f32.mrf.mxu0
        %v746 = vadd.f32 0.0, %v745
        %v747 = vpop.f32.mrf.mxu0
        %748 = vmatprep.mubr.bf16.mxu0 %v679
        %749 = vmatmul.mubr.bf16.gmra.mxu0 %v678
        %v750 = vpop.f32.mrf.mxu0
        %v751 = vadd.f32 0.0, %v750
        %v752 = vpop.f32.mrf.mxu0
        %v753 = vpop.f32.mrf.mxu0
        %v754 = vadd.f32 0.0, %v753
        %v755 = vpop.f32.mrf.mxu0
        %756 = vmatprep.mubr.bf16.mxu0 %v681
        %757 = vmatmul.mubr.bf16.gmra.mxu0 %v680
        %v758 = vpop.f32.mrf.mxu0
        %v759 = vadd.f32 0.0, %v758
        %v760 = vpop.f32.mrf.mxu0
        %v761 = vpop.f32.mrf.mxu0
        %v762 = vpop.f32.mrf.mxu0
        %763 = vdwg.mxu0
        %v764 = vld [vmem:[#allocation10] sm:$0xff]
        %v765 = vld [vmem:[#allocation10 + $0x8] sm:$0xff]
        %v766 = vld [vmem:[#allocation10 + $0x10] sm:$0xff]
        %v767 = vld [vmem:[#allocation10 + $0x18] sm:$0xff]
        %v768 = vld [vmem:[#allocation10 + $0x20] sm:$0xff]
        %v769 = vld [vmem:[#allocation10 + $0x28] sm:$0xff]
        %v770 = vld [vmem:[#allocation10 + $0x30] sm:$0xff]
        %v771 = vld [vmem:[#allocation10 + $0x38] sm:$0xff]
        %v772 = vld [vmem:[#allocation10 + $0x40] sm:$0xff]
        %v782 = vunpack.c.l.b16 %v764
        %v783 = vunpack.c.h.b16 %v764
        %v784 = vunpack.c.l.b16 %v765
        %v785 = vunpack.c.h.b16 %v765
        %v786 = vunpack.c.l.b16 %v766
        %v787 = vunpack.c.h.b16 %v766
        %v788 = vunpack.c.l.b16 %v767
        %v789 = vunpack.c.h.b16 %v767
        %v790 = vunpack.c.l.b16 %v768
        %v791 = vunpack.c.h.b16 %v768
        %v792 = vunpack.c.l.b16 %v769
        %v793 = vunpack.c.h.b16 %v769
        %v794 = vunpack.c.l.b16 %v770
        %v795 = vunpack.c.h.b16 %v770
        %v796 = vunpack.c.l.b16 %v771
        %v797 = vunpack.c.h.b16 %v771
        %v798 = vunpack.c.l.b16 %v772
        %v799 = vunpack.c.h.b16 %v772
        %v800 = vpack.c.b16 %v784, %v782
        %v801 = vpack.c.b16 %v785, %v783
        %v802 = vpack.c.b16 %v788, %v786
        %v803 = vpack.c.b16 %v789, %v787
        %v804 = vpack.c.b16 %v792, %v790
        %v805 = vpack.c.b16 %v793, %v791
        %v806 = vpack.c.b16 %v796, %v794
        %v807 = vpack.c.b16 %v797, %v795
        %v808 = vpack.c.b16 %v798, %v798
        %v809 = vpack.c.b16 %v799, %v799
        %820 = vmatprep.subr.bf16.mxu0 0
        %821 = vmatpush1.bf16.msra.mxu0 %v627
        %822 = vmatprep.subr.bf16.mxu0 0
        %823 = vmatpush1.bf16.msra.mxu0 %v626
        %824 = vmatprep.subr.bf16.mxu0 0
        %825 = vmatpush1.bf16.msra.mxu0 %v625
        %826 = vmatprep.subr.bf16.mxu0 0
        %827 = vmatpush1.bf16.msra.mxu0 %v624
        %828 = vmatprep.subr.bf16.mxu0 0
        %829 = vmatpush1.bf16.msra.mxu0 %v623
        %830 = vmatprep.subr.bf16.mxu0 0
        %831 = vmatpush1.bf16.msra.mxu0 %v622
        %832 = vmatprep.subr.bf16.mxu0 0
        %833 = vmatpush1.bf16.msra.mxu0 %v621
        %834 = vmatprep.subr.bf16.mxu0 0
        %835 = vmatpush1.bf16.msra.mxu0 %v620
        %836 = vmatprep.subr.bf16.mxu0 0
        %837 = vmatpush2.bf16.msra.mxu0 %v635
        %838 = vmatprep.subr.bf16.mxu0 0
        %839 = vmatpush2.bf16.msra.mxu0 %v634
        %840 = vmatprep.subr.bf16.mxu0 0
        %841 = vmatpush2.bf16.msra.mxu0 %v633
        %842 = vmatprep.subr.bf16.mxu0 0
        %843 = vmatpush2.bf16.msra.mxu0 %v632
        %844 = vmatprep.subr.bf16.mxu0 0
        %845 = vmatpush2.bf16.msra.mxu0 %v631
        %846 = vmatprep.subr.bf16.mxu0 0
        %847 = vmatpush2.bf16.msra.mxu0 %v630
        %848 = vmatprep.subr.bf16.mxu0 0
        %849 = vmatpush2.bf16.msra.mxu0 %v629
        %850 = vmatprep.subr.bf16.mxu0 0
        %851 = vmatpush2.bf16.msra.mxu0 %v628
        %852 = vmatprep.mubr.bf16.mxu0 %v801
        %853 = vmatmul.mubr.bf16.gmra.mxu0 %v800
        %v854 = vpop.f32.mrf.mxu0
        %v855 = vadd.f32 0.0, %v854
        %v856 = vpop.f32.mrf.mxu0
        %v857 = vpop.f32.mrf.mxu0
        %v858 = vadd.f32 0.0, %v857
        %v859 = vpop.f32.mrf.mxu0
        %860 = vmatprep.mubr.bf16.mxu0 %v803
        %861 = vmatmul.mubr.bf16.gmra.mxu0 %v802
        %v862 = vpop.f32.mrf.mxu0
        %v863 = vadd.f32 0.0, %v862
        %v864 = vpop.f32.mrf.mxu0
        %v865 = vpop.f32.mrf.mxu0
        %v866 = vadd.f32 0.0, %v865
        %v867 = vpop.f32.mrf.mxu0
        %868 = vmatprep.mubr.bf16.mxu0 %v805
        %869 = vmatmul.mubr.bf16.gmra.mxu0 %v804
        %v870 = vpop.f32.mrf.mxu0
        %v871 = vadd.f32 0.0, %v870
        %v872 = vpop.f32.mrf.mxu0
        %v873 = vpop.f32.mrf.mxu0
        %v874 = vadd.f32 0.0, %v873
        %v875 = vpop.f32.mrf.mxu0
        %876 = vmatprep.mubr.bf16.mxu0 %v807
        %877 = vmatmul.mubr.bf16.gmra.mxu0 %v806
        %v878 = vpop.f32.mrf.mxu0
        %v879 = vadd.f32 0.0, %v878
        %v880 = vpop.f32.mrf.mxu0
        %v881 = vpop.f32.mrf.mxu0
        %v882 = vadd.f32 0.0, %v881
        %v883 = vpop.f32.mrf.mxu0
        %884 = vmatprep.mubr.bf16.mxu0 %v809
        %885 = vmatmul.mubr.bf16.gmra.mxu0 %v808
        %v886 = vpop.f32.mrf.mxu0
        %v887 = vadd.f32 0.0, %v886
        %v888 = vpop.f32.mrf.mxu0
        %v889 = vpop.f32.mrf.mxu0
        %v890 = vpop.f32.mrf.mxu0
        %891 = vdwg.mxu0
        %v892 = vmul.f32 %v727, %v855
        %v893 = vmul.f32 %v730, %v858
        %v894 = vmul.f32 %v735, %v863
        %v895 = vmul.f32 %v738, %v866
        %v896 = vmul.f32 %v743, %v871
        %v897 = vmul.f32 %v746, %v874
        %v898 = vmul.f32 %v751, %v879
        %v899 = vmul.f32 %v754, %v882
        %v900 = vmul.f32 %v759, %v887
        %v901 = vadd.f32 %v892, %v893
        %v902 = vadd.f32 %v901, %v894
        %v903 = vadd.f32 %v902, %v895
        %v904 = vadd.f32 %v903, %v896
        %v905 = vadd.f32 %v904, %v897
        %v906 = vadd.f32 %v905, %v898
        %v907 = vadd.f32 %v906, %v899
        %v908 = vadd.f32 %v907, %v900
        %v909 = vrot.slane %v908, 4
        %v910 = vadd.f32 %v908, %v909
        %v911 = vrot.slane %v910, 2
        %v912 = vadd.f32 %v910, %v911
        %v913 = vrot.slane %v912, 1
        %v914 = vadd.f32 %v912, %v913
        %v915 = vld [vmem:[%s368] sm:$0xff]
        %v916 = vld [vmem:[%s4] sm:$0xff]
        %918 = vset.pattern.permute.xlu0 0
        %919 = vperm.xlu0 %918, %v916
        %v920 = vpop.permute.xlu0 %919
        %v922 = vmul.f32 %v915, %v920
        %v923 = vrot.slane %v922, 4
        %v924 = vadd.f32 %v922, %v923
        %v925 = vrot.slane %v924, 2
        %v926 = vadd.f32 %v924, %v925
        %v927 = vrot.slane %v926, 1
        %v928 = vadd.f32 %v926, %v927
        %s929 = sld [smem:[#allocation2]]
        %v930 = vstv %s929
        %v931 = vadd.f32 %v928, %v930
        %v932 = vadd.f32 %v914, %v931
        %s933 = sld [smem:[#allocation3]]
        %v934 = vstv %s933
        %v935 = vmul.f32 %v932, %v934
        %s936 = sld [smem:[#allocation4]]
        %v937 = vstv %s936
        %v938 = vadd.f32 %v935, %v937
        %939 = vst [vmem:[%s364] sm:$0x1] %v938
        %s940 = sand.u32 %s215, 1
        %s941 = scalar_lea.sflag [#allocation7], %s940
        %s942 = sand.u32 %s215, 1
        %s943 = scalar_lea.vmem [#allocation11], %s942
        // Predicated region
        $region65: #{tpu_custom_call.1} parent=51 // pred_check
          %p944 = pneg %p225
        $region66: #{tpu_custom_call.1} parent=51 // pred_check_branch
          %946 = sbr.rel (%p944) target = $region68
        $region67: #{tpu_custom_call.1} parent=51 // pred_region
          %s948 = ssub.s32 16, 16
          %949 = vsyncadd %s941, %s948
          %s950 = smul.addr %s29, 16
          %s951 = scalar_lea.hbm %s8, %s950
          %s953 = sshll.u32 %s943, 4
          %s954 = int_to_ptr.vmem [resolvable:$true] %s953
          %956 = dma.vmem_to_hbm [thread:$0]  %s954, 16, %s951, %s941
        $region68: #{tpu_custom_call.1} parent=51 // pred_fallthru
          _
      $region52: #{tpu_custom_call.1} parent=5 // pred_fallthru
        _
      %p957 = scmp.le.s32.totalorder 2, %s24
      // Predicated region
      $region69: #{tpu_custom_call.1} parent=5 // pred_check
        %p958 = pneg %p957
      $region70: #{tpu_custom_call.1} parent=5 // pred_check_branch
        %960 = sbr.rel (%p958) target = $region72
      $region71: #{tpu_custom_call.1} parent=5 // pred_region
        %s961 = ssub.s32 %s24, 2
        // Predicated region
        $region73: #{tpu_custom_call.1} parent=71 // pred_check
          %p962 = pneg %p231
        $region74: #{tpu_custom_call.1} parent=71 // pred_check_branch
          %964 = sbr.rel (%p962) target = $region76
        $region75: #{tpu_custom_call.1} parent=71 // pred_region
          %s965 = sand.u32 %s216, 1
          %s966 = scalar_lea.sflag [#allocation7], %s965
          %s967 = sand.u32 %s216, 1
          %s968 = scalar_lea.vmem [#allocation11], %s967
          %969 = dma.done %s966, 16
        $region76: #{tpu_custom_call.1} parent=71 // pred_fallthru
          _
      $region72: #{tpu_custom_call.1} parent=5 // pred_fallthru
        _
    $region6: #{tpu_custom_call.1} parent=1 // loop_footer
      %s28 = sadd.s32 1, %s24
    $region7: #{tpu_custom_call.1} parent=1 // loop_footer_branch
      %23 = sbr.rel target = $region3
    $region8: #{tpu_custom_call.1} parent=1 // loop_exit
      _
    %970 = vsyncpa [#allocation6], 1
    %s971 = scalar_lea.sflag [#allocation6], 1
    %972 = vsyncpa %s971, 1
    %973 = vsyncpa [#allocation9], 1
    %974 = vsyncpa [#allocation7], 1
    %s975 = scalar_lea.sflag [#allocation7], 1
    %976 = vsyncpa %s975, 1

</llo_original>
